<compile_context>
chip_gen: v5e
topology: v5e:2x2
jax: 0.10.0
libtpu: 0.0.40
codegen_flags: <defaults>
</compile_context>

<pallas_src>
import functools
import math

import numpy as np
import jax
import jax.numpy as jnp
from jax import lax
from jax.experimental import pallas as pl


# ---------------------------------------------------------------------------
# Config (the fields Model.__init__ reads from `config`)
# ---------------------------------------------------------------------------
CFG = dict(
    seq_len=16, pred_len=8, enc_in=4, d_model=32, e_layers=1,
    ssm_expand=2, d_state=16, d_conv=4, r_ff=2,
    use_norm=True, revin_affine=True, use_mark=False,
    channel_independence=False, dropout=0.0,
)


# ---------------------------------------------------------------------------
# Small helpers
# ---------------------------------------------------------------------------
def _layer_norm_val(x, g, b, eps=1e-5):
    """LayerNorm over the last (lane) axis, on in-kernel values."""
    mu = jnp.mean(x, axis=-1, keepdims=True)
    xc = x - mu
    var = jnp.mean(xc * xc, axis=-1, keepdims=True)
    return xc * lax.rsqrt(var + eps) * g + b


def _softplus(x):
    return jnp.maximum(x, 0.0) + jnp.log(1.0 + jnp.exp(-jnp.abs(x)))


def _round8(n):
    return -(-n // 8) * 8


# ---------------------------------------------------------------------------
# Parameter slab layout: every weight lives in ONE (rows, 128) f32 operand,
# each block starting at an 8-aligned row so in-kernel loads stay tile-aligned.
# ---------------------------------------------------------------------------
def _slab_layout(cfg):
    D = cfg["d_model"]; L = cfg["seq_len"]; P = cfg["pred_len"]; N = cfg["enc_in"]
    Din = cfg["ssm_expand"] * D
    S = cfg["d_state"]; K = cfg["d_conv"]; H = cfg["r_ff"] * D
    nl = cfg["e_layers"]

    layout = {}
    off = 0
    max_cols = 1

    def add(name, rows, cols):
        nonlocal off, max_cols
        layout[name] = (off, rows, cols)
        off += _round8(rows)
        max_cols = max(max_cols, cols)

    # globals
    add("revin_w", 1, N); add("revin_b", 1, N)
    add("emb_wT", D, L)                       # embedding weight stored transposed
    add("emb_b", 1, D)
    add("norm_f_g", 1, D); add("norm_f_b", 1, D)
    add("proj_wT", P, D)                      # projector weight stored transposed
    add("proj_b", P, 1)                       # projector bias stored as a column
    # per-layer
    for l in range(nl):
        p = f"l{l}_"
        add(p + "ln1_g", 1, D); add(p + "ln1_b", 1, D)
        add(p + "in_w_x", D, Din); add(p + "in_w_z", D, Din)   # lane-aligned halves
        add(p + "conv_w", K, Din); add(p + "conv_b", 1, Din)
        add(p + "xb_wT", S, Din); add(p + "xc_wT", S, Din)
        add(p + "w_dt", Din, Din)             # x_dt_w @ dt_proj_w folded at pack time
        add(p + "dt_b", 1, Din)
        add(p + "A", S, Din); add(p + "D", 1, Din)
        add(p + "out_w", Din, D)
        add(p + "ln2_g", 1, D); add(p + "ln2_b", 1, D)
        add(p + "fc1_w", D, H); add(p + "fc1_b", 1, H)
        add(p + "fc2_w", H, D); add(p + "fc2_b", 1, D)

    lanes = max(128, -(-max_cols // 128) * 128)
    return layout, _round8(off), lanes


def pack_params(params, cfg):
    """One-time host-side packing of all parameters into the weight slab."""
    layout, rows_total, lanes = _slab_layout(cfg)
    slab = np.zeros((rows_total, lanes), np.float32)

    def put(name, arr):
        off, r, c = layout[name]
        slab[off:off + r, :c] = np.asarray(arr, np.float32).reshape(r, c)

    Din = cfg["ssm_expand"] * cfg["d_model"]
    put("revin_w", params["revin_w"]); put("revin_b", params["revin_b"])
    put("emb_wT", np.asarray(params["emb_w"]).T)
    put("emb_b", params["emb_b"])
    put("norm_f_g", params["norm_f_g"]); put("norm_f_b", params["norm_f_b"])
    put("proj_wT", np.asarray(params["proj_w"]).T)
    put("proj_b", np.asarray(params["proj_b"]).reshape(-1, 1))
    for l in range(cfg["e_layers"]):
        p = f"l{l}_"
        put(p + "ln1_g", params["ln1_g"][l]); put(p + "ln1_b", params["ln1_b"][l])
        ipw = np.asarray(params["in_proj_w"][l])
        put(p + "in_w_x", ipw[:, :Din]); put(p + "in_w_z", ipw[:, Din:])
        put(p + "conv_w", params["conv_w"][l]); put(p + "conv_b", params["conv_b"][l])
        put(p + "xb_wT", params["x_B_wT"][l]); put(p + "xc_wT", params["x_C_wT"][l])
        w_dt = np.asarray(params["x_dt_w"][l]) @ np.asarray(params["dt_proj_w"][l])
        put(p + "w_dt", w_dt)
        put(p + "dt_b", params["dt_proj_b"][l])
        put(p + "A", params["A"][l]); put(p + "D", params["D"][l])
        put(p + "out_w", params["out_proj_w"][l])
        put(p + "ln2_g", params["ln2_g"][l]); put(p + "ln2_b", params["ln2_b"][l])
        put(p + "fc1_w", params["fc1_w"][l]); put(p + "fc1_b", params["fc1_b"][l])
        put(p + "fc2_w", params["fc2_w"][l]); put(p + "fc2_b", params["fc2_b"][l])
    return jnp.asarray(slab)


# ---------------------------------------------------------------------------
# The single fused forward kernel
# ---------------------------------------------------------------------------
def _fused_forward_kernel(
    x_ref,            # (B, L, N) raw input, native layout
    slab_ref,         # (rows, 128) packed weights
    o_ref,            # (B, pred_len, N) output, native layout
    *, layout, n_layers, B, N, d_inner, d_conv, scan_b, scan_n, use_norm, eps,
):
    f32 = jnp.float32
    M = B * N

    def w(name):
        off, rows, cols = layout[name]
        return slab_ref[off:off + rows, :cols]

    rw = w("revin_w") if use_norm else None          # (1, N)
    rb = w("revin_b") if use_norm else None          # (1, N)

    # ---- RevIN 'norm' + series embedding, per batch, no host-side transpose ----
    # TODO(synk): use_mark=True mark-concat branch of SeriesEmbedding not implemented.
    emb_wT = w("emb_wT")                             # (D, L)
    emb_b = w("emb_b")                               # (1, D)
    eye_n = (lax.broadcasted_iota(jnp.int32, (N, N), 0)
             == lax.broadcasted_iota(jnp.int32, (N, N), 1)).astype(f32)

    tok_blocks, means, stds = [], [], []
    for b in range(B):
        xb = x_ref[b]                                # (L, N)
        if use_norm:
            mu = jnp.mean(xb, axis=0, keepdims=True)             # (1, N)
            xc = xb - mu
            var = jnp.mean(xc * xc, axis=0, keepdims=True)
            sd = jnp.sqrt(var + eps)
            xn = xc / sd * rw + rb                                # per-channel affine
            means.append(mu); stds.append(sd)
        else:
            xn = xb
        tok_bT = lax.dot_general(emb_wT, xn, (((1,), (0,)), ((), ())),
                                 preferred_element_type=f32)      # (D, N)
        # token transpose via identity matmul (safe (1,1)-contraction form)
        tok_b = lax.dot_general(eye_n, tok_bT, (((1,), (1,)), ((), ())),
                                preferred_element_type=f32) + emb_b   # (N, D)
        tok_blocks.append(tok_b)
    tok = tok_blocks[0] if B == 1 else jnp.concatenate(tok_blocks, axis=0)  # (M, D)

    # causal-conv segment-validity masks, hoisted out of the layer loop
    n_shift = min(d_conv, scan_n) - 1
    conv_masks = []
    if n_shift > 0:
        row_iota = lax.broadcasted_iota(jnp.int32, (M, 1), 0)
        for d in range(1, n_shift + 1):
            m = None
            for s in range(scan_b):
                ms = jnp.logical_and(row_iota >= s * scan_n + d,
                                     row_iota < (s + 1) * scan_n)
                m = ms if m is None else jnp.logical_or(m, ms)
            conv_masks.append(m)

    # TODO(synk): MambaForSeriesForecasting source not provided; reconstructed as
    # pre-norm Mamba blocks (forward selective scan + MLP), depth = e_layers.
    for l in range(n_layers):
        p = f"l{l}_"
        # ============================ SSM branch ============================
        h1 = _layer_norm_val(tok, w(p + "ln1_g"), w(p + "ln1_b"))
        x1 = jnp.dot(h1, w(p + "in_w_x"), preferred_element_type=f32)   # (M, Din)
        z = jnp.dot(h1, w(p + "in_w_z"), preferred_element_type=f32)    # (M, Din)

        # causal depthwise conv: static sublane shifts of a zero-padded copy,
        # masked per scan segment (VPU only — no MXU, no O(M^2) shift operand)
        cw = w(p + "conv_w")                                            # (K, Din)
        acc = x1 * cw[d_conv - 1:d_conv, :]
        if n_shift > 0:
            x1p = jnp.concatenate(
                [jnp.zeros((n_shift, d_inner), f32), x1], axis=0)       # (M+n_shift, Din)
            for d in range(1, n_shift + 1):
                shifted = x1p[n_shift - d:n_shift - d + M, :]           # x1 shifted by d
                acc = acc + jnp.where(conv_masks[d - 1], shifted, 0.0) \
                    * cw[d_conv - 1 - d:d_conv - d, :]
        acc = acc + w(p + "conv_b")
        u = acc * jax.nn.sigmoid(acc)                                   # SiLU -> scan input

        # x_proj: B/C pre-transposed to (S, M); dt low-rank pair folded at pack time
        bmat_t = lax.dot_general(w(p + "xb_wT"), u, (((1,), (1,)), ((), ())),
                                 preferred_element_type=f32)            # (S, M)
        cmat_t = lax.dot_general(w(p + "xc_wT"), u, (((1,), (1,)), ((), ())),
                                 preferred_element_type=f32)            # (S, M)
        dt = _softplus(jnp.dot(u, w(p + "w_dt"), preferred_element_type=f32)
                       + w(p + "dt_b"))                                  # (M, Din)

        a_l = w(p + "A")                                                 # (S, Din)
        silu_z = z * jax.nn.sigmoid(z)
        dtu = dt * u
        du = u * w(p + "D")

        # ---------------------- selective scan ----------------------
        # exp / outer products / C-readout hoisted off the recurrence; only the
        # FMA chain h_t = dA_t*h_{t-1} + dB_t*u_t is serial, per independent segment.
        y_rows = []
        for s in range(scan_b):
            base = s * scan_n
            dbu = [bmat_t[:, base + t:base + t + 1] * dtu[base + t:base + t + 1, :]
                   for t in range(scan_n)]                               # (S, Din) each
            da = [jnp.exp(a_l * dt[base + t:base + t + 1, :])
                  for t in range(1, scan_n)]                             # (S, Din) each
            h = dbu[0]                                                   # h_0 (state starts at 0)
            hs = [h]
            for t in range(1, scan_n):
                h = da[t - 1] * h + dbu[t]
                hs.append(h)
            for t in range(scan_n):
                y_rows.append(jnp.sum(cmat_t[:, base + t:base + t + 1] * hs[t],
                                      axis=0, keepdims=True))            # (1, Din)
        y = y_rows[0] if M == 1 else jnp.concatenate(y_rows, axis=0)      # (M, Din)
        y = (y + du) * silu_z

        tok = tok + jnp.dot(y, w(p + "out_w"), preferred_element_type=f32)   # residual

        # ============================ MLP branch ============================
        h2 = _layer_norm_val(tok, w(p + "ln2_g"), w(p + "ln2_b"))
        mm = jnp.dot(h2, w(p + "fc1_w"), preferred_element_type=f32) + w(p + "fc1_b")
        mm = jax.nn.gelu(mm, approximate=True)
        mm = jnp.dot(mm, w(p + "fc2_w"), preferred_element_type=f32) + w(p + "fc2_b")
        tok = tok + mm

    # ---- final norm + projector (output produced pre-transposed) + RevIN denorm ----
    tok = _layer_norm_val(tok, w("norm_f_g"), w("norm_f_b"))
    predT = lax.dot_general(w("proj_wT"), tok, (((1,), (1,)), ((), ())),
                            preferred_element_type=f32) + w("proj_b")     # (P, M)

    for b in range(B):
        blk = predT[:, b * N:(b + 1) * N]                                 # (P, N)
        if use_norm:
            blk = (blk - rb) / (rw + eps * eps) * stds[b] + means[b]
        o_ref[b] = blk


# ---------------------------------------------------------------------------
# Parameter init (deterministic, synthetic); per-layer tensors stacked on dim 0
# ---------------------------------------------------------------------------
def init_params(key, cfg):
    d_model = cfg["d_model"]
    L, P, N = cfg["seq_len"], cfg["pred_len"], cfg["enc_in"]
    Din = cfg["ssm_expand"] * d_model
    S, K = cfg["d_state"], cfg["d_conv"]
    nl = cfg["e_layers"]
    dt_rank = max(1, math.ceil(d_model / 16))
    H = cfg["r_ff"] * d_model
    keys = iter(jax.random.split(key, 64))

    def w(shape, scale=0.02):
        return (scale * jax.random.normal(next(keys), shape)).astype(jnp.float32)

    a = -jnp.tile(jnp.arange(1, S + 1, dtype=jnp.float32)[:, None], (1, Din))   # (S, Din)

    return dict(
        revin_w=jnp.ones((N,), jnp.float32),
        revin_b=jnp.zeros((N,), jnp.float32),
        emb_w=w((L, d_model)), emb_b=jnp.zeros((1, d_model), jnp.float32),
        ln1_g=jnp.ones((nl, 1, d_model), jnp.float32),
        ln1_b=jnp.zeros((nl, 1, d_model), jnp.float32),
        in_proj_w=w((nl, d_model, 2 * Din)),
        conv_w=w((nl, K, Din), 0.1),
        conv_b=jnp.zeros((nl, 1, Din), jnp.float32),
        x_dt_w=w((nl, Din, dt_rank)),
        x_B_wT=w((nl, S, Din)),          # stored pre-transposed: (d_state, d_inner)
        x_C_wT=w((nl, S, Din)),
        dt_proj_w=w((nl, dt_rank, Din), 0.5),
        dt_proj_b=jnp.full((nl, 1, Din), 0.5, jnp.float32),
        A=jnp.tile(a[None], (nl, 1, 1)),
        D=jnp.ones((nl, 1, Din), jnp.float32),
        out_proj_w=w((nl, Din, d_model)),
        ln2_g=jnp.ones((nl, 1, d_model), jnp.float32),
        ln2_b=jnp.zeros((nl, 1, d_model), jnp.float32),
        fc1_w=w((nl, d_model, H)), fc1_b=jnp.zeros((nl, 1, H), jnp.float32),
        fc2_w=w((nl, H, d_model)), fc2_b=jnp.zeros((nl, 1, d_model), jnp.float32),
        norm_f_g=jnp.ones((1, d_model), jnp.float32),
        norm_f_b=jnp.zeros((1, d_model), jnp.float32),
        proj_w=w((d_model, P)), proj_b=jnp.zeros((1, P), jnp.float32),
    )


# ---------------------------------------------------------------------------
# Full forward (Model.forward -> forecast path): ONE pallas_call, no host glue
# ---------------------------------------------------------------------------
def timesmamba_forward(slab, x_enc, x_mark_enc=None, x_dec=None, x_mark_dec=None):
    cfg = CFG
    B, L, N = x_enc.shape
    P = cfg["pred_len"]
    d_inner = cfg["ssm_expand"] * cfg["d_model"]
    K = cfg["d_conv"]
    M = B * N

    # channel_independence only changes how tokens group into scanned sequences
    if cfg["channel_independence"]:
        scan_b, scan_n = M, 1
    else:
        scan_b, scan_n = B, N

    layout, _, _ = _slab_layout(cfg)

    kernel = functools.partial(
        _fused_forward_kernel,
        layout=layout, n_layers=cfg["e_layers"], B=B, N=N,
        d_inner=d_inner, d_conv=K, scan_b=scan_b, scan_n=scan_n,
        use_norm=bool(cfg["use_norm"]), eps=1e-5,
    )

    # Gridless single invocation: 2 operand DMAs (raw input + packed weight slab),
    # everything VMEM resident, output emitted directly as (B, pred_len, N).
    # (Model.forward's trailing [:, -pred_len:, :] is a no-op and is dropped.)
    return pl.pallas_call(
        kernel,
        out_shape=jax.ShapeDtypeStruct((B, P, N), jnp.float32),
    )(x_enc, slab)


if __name__ == "__main__":
    key = jax.random.PRNGKey(0)
    pkey, xkey, mkey = jax.random.split(key, 3)
    params = init_params(pkey, CFG)
    slab = pack_params(params, CFG)          # one-time packing (not per call)

    B = 2
    x_enc = jax.random.normal(xkey, (B, CFG["seq_len"], CFG["enc_in"]), jnp.float32)
    x_mark_enc = jax.random.normal(mkey, (B, CFG["seq_len"], 3), jnp.float32)  # unused (use_mark=False)

    fwd = jax.jit(timesmamba_forward)
    out = jax.block_until_ready(fwd(slab, x_enc))
    assert out.shape == (B, CFG["pred_len"], CFG["enc_in"]), out.shape
    assert bool(jnp.all(jnp.isfinite(out)))
    print("KERNEL_OK")
</pallas_src>

<mosaic_0001>
module attributes {stable_mosaic.version = 11 : i64} {
  func.func @_fused_forward_kernel(%arg0: memref<2x16x4xf32, #tpu.memory_space<vmem>>, %arg1: memref<504x128xf32, #tpu.memory_space<vmem>>, %arg2: memref<2x8x4xf32, #tpu.memory_space<vmem>>) attributes {dimension_semantics = [], scalar_prefetch = 0 : i64, scratch_operands = 0 : i64, tpu.core_type = #tpu.core_type<tc>} {
    %c0 = arith.constant 0 : index
    %c0_0 = arith.constant 0 : index
    %0 = vector.load %arg1[%c0, %c0_0] : memref<504x128xf32, #tpu.memory_space<vmem>>, vector<1x4xf32>
    %c8 = arith.constant 8 : index
    %c0_1 = arith.constant 0 : index
    %1 = vector.load %arg1[%c8, %c0_1] : memref<504x128xf32, #tpu.memory_space<vmem>>, vector<1x4xf32>
    %c16 = arith.constant 16 : index
    %c0_2 = arith.constant 0 : index
    %2 = vector.load %arg1[%c16, %c0_2] : memref<504x128xf32, #tpu.memory_space<vmem>>, vector<32x16xf32>
    %c48 = arith.constant 48 : index
    %c0_3 = arith.constant 0 : index
    %3 = vector.load %arg1[%c48, %c0_3] : memref<504x128xf32, #tpu.memory_space<vmem>>, vector<1x32xf32>
    %4 = tpu.iota {dimensions = array<i32: 0>} : vector<4x4xi32>
    %5 = tpu.iota {dimensions = array<i32: 1>} : vector<4x4xi32>
    %6 = arith.cmpi eq, %4, %5 : vector<4x4xi32>
    %7 = arith.extui %6 : vector<4x4xi1> to vector<4x4xi32>
    %8 = arith.sitofp %7 : vector<4x4xi32> to vector<4x4xf32>
    %c0_4 = arith.constant 0 : index
    %c0_5 = arith.constant 0 : index
    %c0_6 = arith.constant 0 : index
    %9 = vector.load %arg0[%c0_4, %c0_5, %c0_6] : memref<2x16x4xf32, #tpu.memory_space<vmem>>, vector<1x16x4xf32>
    %10 = vector.shape_cast %9 : vector<1x16x4xf32> to vector<16x4xf32>
    %cst = arith.constant dense<0.000000e+00> : vector<4xf32>
    %11 = vector.multi_reduction <add>, %10, %cst [0] : vector<16x4xf32> to vector<4xf32>
    %12 = vector.shape_cast %11 : vector<4xf32> to vector<1x4xf32>
    %cst_7 = arith.constant 1.600000e+01 : f32
    %13 = vector.broadcast %cst_7 : f32 to vector<1x4xf32>
    %14 = arith.divf %12, %13 : vector<1x4xf32>
    %15 = vector.broadcast %14 : vector<1x4xf32> to vector<16x4xf32>
    %16 = arith.subf %10, %15 : vector<16x4xf32>
    %17 = arith.mulf %16, %16 : vector<16x4xf32>
    %cst_8 = arith.constant dense<0.000000e+00> : vector<4xf32>
    %18 = vector.multi_reduction <add>, %17, %cst_8 [0] : vector<16x4xf32> to vector<4xf32>
    %19 = vector.shape_cast %18 : vector<4xf32> to vector<1x4xf32>
    %cst_9 = arith.constant 1.600000e+01 : f32
    %20 = vector.broadcast %cst_9 : f32 to vector<1x4xf32>
    %21 = arith.divf %19, %20 : vector<1x4xf32>
    %cst_10 = arith.constant 9.99999974E-6 : f32
    %22 = vector.broadcast %cst_10 : f32 to vector<1x4xf32>
    %23 = arith.addf %21, %22 : vector<1x4xf32>
    %24 = math.sqrt %23 : vector<1x4xf32>
    %25 = vector.broadcast %24 : vector<1x4xf32> to vector<16x4xf32>
    %26 = arith.divf %16, %25 : vector<16x4xf32>
    %27 = vector.broadcast %0 : vector<1x4xf32> to vector<16x4xf32>
    %28 = arith.mulf %26, %27 : vector<16x4xf32>
    %29 = vector.broadcast %1 : vector<1x4xf32> to vector<16x4xf32>
    %30 = arith.addf %28, %29 : vector<16x4xf32>
    %cst_11 = arith.constant dense<0.000000e+00> : vector<32x4xf32>
    %31 = tpu.matmul %2, %30, %cst_11 {dimension_numbers = #tpu.dot_dimension_numbers<[1], [0], [0], [1], [0, 0, 1, 1], [], []>} : vector<32x16xf32>, vector<16x4xf32>, vector<32x4xf32> -> vector<32x4xf32>
    %cst_12 = arith.constant dense<0.000000e+00> : vector<4x32xf32>
    %32 = tpu.matmul %8, %31, %cst_12 {dimension_numbers = #tpu.dot_dimension_numbers<[1], [1], [0], [0], [0, 0, 1, 0], [], []>} : vector<4x4xf32>, vector<32x4xf32>, vector<4x32xf32> -> vector<4x32xf32>
    %33 = vector.broadcast %3 : vector<1x32xf32> to vector<4x32xf32>
    %34 = arith.addf %32, %33 : vector<4x32xf32>
    %c1 = arith.constant 1 : index
    %c0_13 = arith.constant 0 : index
    %c0_14 = arith.constant 0 : index
    %35 = vector.load %arg0[%c1, %c0_13, %c0_14] : memref<2x16x4xf32, #tpu.memory_space<vmem>>, vector<1x16x4xf32>
    %36 = vector.shape_cast %35 : vector<1x16x4xf32> to vector<16x4xf32>
    %cst_15 = arith.constant dense<0.000000e+00> : vector<4xf32>
    %37 = vector.multi_reduction <add>, %36, %cst_15 [0] : vector<16x4xf32> to vector<4xf32>
    %38 = vector.shape_cast %37 : vector<4xf32> to vector<1x4xf32>
    %cst_16 = arith.constant 1.600000e+01 : f32
    %39 = vector.broadcast %cst_16 : f32 to vector<1x4xf32>
    %40 = arith.divf %38, %39 : vector<1x4xf32>
    %41 = vector.broadcast %40 : vector<1x4xf32> to vector<16x4xf32>
    %42 = arith.subf %36, %41 : vector<16x4xf32>
    %43 = arith.mulf %42, %42 : vector<16x4xf32>
    %cst_17 = arith.constant dense<0.000000e+00> : vector<4xf32>
    %44 = vector.multi_reduction <add>, %43, %cst_17 [0] : vector<16x4xf32> to vector<4xf32>
    %45 = vector.shape_cast %44 : vector<4xf32> to vector<1x4xf32>
    %cst_18 = arith.constant 1.600000e+01 : f32
    %46 = vector.broadcast %cst_18 : f32 to vector<1x4xf32>
    %47 = arith.divf %45, %46 : vector<1x4xf32>
    %cst_19 = arith.constant 9.99999974E-6 : f32
    %48 = vector.broadcast %cst_19 : f32 to vector<1x4xf32>
    %49 = arith.addf %47, %48 : vector<1x4xf32>
    %50 = math.sqrt %49 : vector<1x4xf32>
    %51 = vector.broadcast %50 : vector<1x4xf32> to vector<16x4xf32>
    %52 = arith.divf %42, %51 : vector<16x4xf32>
    %53 = vector.broadcast %0 : vector<1x4xf32> to vector<16x4xf32>
    %54 = arith.mulf %52, %53 : vector<16x4xf32>
    %55 = vector.broadcast %1 : vector<1x4xf32> to vector<16x4xf32>
    %56 = arith.addf %54, %55 : vector<16x4xf32>
    %cst_20 = arith.constant dense<0.000000e+00> : vector<32x4xf32>
    %57 = tpu.matmul %2, %56, %cst_20 {dimension_numbers = #tpu.dot_dimension_numbers<[1], [0], [0], [1], [0, 0, 1, 1], [], []>} : vector<32x16xf32>, vector<16x4xf32>, vector<32x4xf32> -> vector<32x4xf32>
    %cst_21 = arith.constant dense<0.000000e+00> : vector<4x32xf32>
    %58 = tpu.matmul %8, %57, %cst_21 {dimension_numbers = #tpu.dot_dimension_numbers<[1], [1], [0], [0], [0, 0, 1, 0], [], []>} : vector<4x4xf32>, vector<32x4xf32>, vector<4x32xf32> -> vector<4x32xf32>
    %59 = vector.broadcast %3 : vector<1x32xf32> to vector<4x32xf32>
    %60 = arith.addf %58, %59 : vector<4x32xf32>
    %61 = tpu.concatenate %34, %60 in 0 : vector<4x32xf32>, vector<4x32xf32> -> vector<8x32xf32>
    %62 = tpu.iota {dimensions = array<i32: 0>} : vector<8x1xi32>
    %c1_i32 = arith.constant 1 : i32
    %63 = vector.broadcast %c1_i32 : i32 to vector<8x1xi32>
    %64 = arith.cmpi sge, %62, %63 : vector<8x1xi32>
    %c4_i32 = arith.constant 4 : i32
    %65 = vector.broadcast %c4_i32 : i32 to vector<8x1xi32>
    %66 = arith.cmpi slt, %62, %65 : vector<8x1xi32>
    %67 = arith.andi %64, %66 : vector<8x1xi1>
    %c5_i32 = arith.constant 5 : i32
    %68 = vector.broadcast %c5_i32 : i32 to vector<8x1xi32>
    %69 = arith.cmpi sge, %62, %68 : vector<8x1xi32>
    %c8_i32 = arith.constant 8 : i32
    %70 = vector.broadcast %c8_i32 : i32 to vector<8x1xi32>
    %71 = arith.cmpi slt, %62, %70 : vector<8x1xi32>
    %72 = arith.andi %69, %71 : vector<8x1xi1>
    %73 = arith.ori %67, %72 : vector<8x1xi1>
    %c2_i32 = arith.constant 2 : i32
    %74 = vector.broadcast %c2_i32 : i32 to vector<8x1xi32>
    %75 = arith.cmpi sge, %62, %74 : vector<8x1xi32>
    %c4_i32_22 = arith.constant 4 : i32
    %76 = vector.broadcast %c4_i32_22 : i32 to vector<8x1xi32>
    %77 = arith.cmpi slt, %62, %76 : vector<8x1xi32>
    %78 = arith.andi %75, %77 : vector<8x1xi1>
    %c6_i32 = arith.constant 6 : i32
    %79 = vector.broadcast %c6_i32 : i32 to vector<8x1xi32>
    %80 = arith.cmpi sge, %62, %79 : vector<8x1xi32>
    %c8_i32_23 = arith.constant 8 : i32
    %81 = vector.broadcast %c8_i32_23 : i32 to vector<8x1xi32>
    %82 = arith.cmpi slt, %62, %81 : vector<8x1xi32>
    %83 = arith.andi %80, %82 : vector<8x1xi1>
    %84 = arith.ori %78, %83 : vector<8x1xi1>
    %c3_i32 = arith.constant 3 : i32
    %85 = vector.broadcast %c3_i32 : i32 to vector<8x1xi32>
    %86 = arith.cmpi sge, %62, %85 : vector<8x1xi32>
    %c4_i32_24 = arith.constant 4 : i32
    %87 = vector.broadcast %c4_i32_24 : i32 to vector<8x1xi32>
    %88 = arith.cmpi slt, %62, %87 : vector<8x1xi32>
    %89 = arith.andi %86, %88 : vector<8x1xi1>
    %c7_i32 = arith.constant 7 : i32
    %90 = vector.broadcast %c7_i32 : i32 to vector<8x1xi32>
    %91 = arith.cmpi sge, %62, %90 : vector<8x1xi32>
    %c8_i32_25 = arith.constant 8 : i32
    %92 = vector.broadcast %c8_i32_25 : i32 to vector<8x1xi32>
    %93 = arith.cmpi slt, %62, %92 : vector<8x1xi32>
    %94 = arith.andi %91, %93 : vector<8x1xi1>
    %95 = arith.ori %89, %94 : vector<8x1xi1>
    %c88 = arith.constant 88 : index
    %c0_26 = arith.constant 0 : index
    %96 = vector.load %arg1[%c88, %c0_26] : memref<504x128xf32, #tpu.memory_space<vmem>>, vector<1x32xf32>
    %c96 = arith.constant 96 : index
    %c0_27 = arith.constant 0 : index
    %97 = vector.load %arg1[%c96, %c0_27] : memref<504x128xf32, #tpu.memory_space<vmem>>, vector<1x32xf32>
    %cst_28 = arith.constant dense<0.000000e+00> : vector<8xf32>
    %98 = vector.multi_reduction <add>, %61, %cst_28 [1] : vector<8x32xf32> to vector<8xf32>
    %99 = vector.shape_cast %98 : vector<8xf32> to vector<8x1xf32>
    %cst_29 = arith.constant 3.200000e+01 : f32
    %100 = vector.broadcast %cst_29 : f32 to vector<8x1xf32>
    %101 = arith.divf %99, %100 : vector<8x1xf32>
    %102 = vector.broadcast %101 : vector<8x1xf32> to vector<8x32xf32>
    %103 = arith.subf %61, %102 : vector<8x32xf32>
    %104 = arith.mulf %103, %103 : vector<8x32xf32>
    %cst_30 = arith.constant dense<0.000000e+00> : vector<8xf32>
    %105 = vector.multi_reduction <add>, %104, %cst_30 [1] : vector<8x32xf32> to vector<8xf32>
    %106 = vector.shape_cast %105 : vector<8xf32> to vector<8x1xf32>
    %cst_31 = arith.constant 3.200000e+01 : f32
    %107 = vector.broadcast %cst_31 : f32 to vector<8x1xf32>
    %108 = arith.divf %106, %107 : vector<8x1xf32>
    %cst_32 = arith.constant 9.99999974E-6 : f32
    %109 = vector.broadcast %cst_32 : f32 to vector<8x1xf32>
    %110 = arith.addf %108, %109 : vector<8x1xf32>
    %111 = math.rsqrt %110 : vector<8x1xf32>
    %112 = vector.broadcast %111 : vector<8x1xf32> to vector<8x32xf32>
    %113 = arith.mulf %103, %112 : vector<8x32xf32>
    %114 = vector.broadcast %96 : vector<1x32xf32> to vector<8x32xf32>
    %115 = arith.mulf %113, %114 : vector<8x32xf32>
    %116 = vector.broadcast %97 : vector<1x32xf32> to vector<8x32xf32>
    %117 = arith.addf %115, %116 : vector<8x32xf32>
    %c104 = arith.constant 104 : index
    %c0_33 = arith.constant 0 : index
    %118 = vector.load %arg1[%c104, %c0_33] : memref<504x128xf32, #tpu.memory_space<vmem>>, vector<32x64xf32>
    %cst_34 = arith.constant dense<0.000000e+00> : vector<8x64xf32>
    %119 = tpu.matmul %117, %118, %cst_34 {dimension_numbers = #tpu.dot_dimension_numbers<[1], [0], [0], [1], [0, 0, 1, 1], [], []>} : vector<8x32xf32>, vector<32x64xf32>, vector<8x64xf32> -> vector<8x64xf32>
    %c136 = arith.constant 136 : index
    %c0_35 = arith.constant 0 : index
    %120 = vector.load %arg1[%c136, %c0_35] : memref<504x128xf32, #tpu.memory_space<vmem>>, vector<32x64xf32>
    %cst_36 = arith.constant dense<0.000000e+00> : vector<8x64xf32>
    %121 = tpu.matmul %117, %120, %cst_36 {dimension_numbers = #tpu.dot_dimension_numbers<[1], [0], [0], [1], [0, 0, 1, 1], [], []>} : vector<8x32xf32>, vector<32x64xf32>, vector<8x64xf32> -> vector<8x64xf32>
    %c168 = arith.constant 168 : index
    %c0_37 = arith.constant 0 : index
    %122 = vector.load %arg1[%c168, %c0_37] : memref<504x128xf32, #tpu.memory_space<vmem>>, vector<4x64xf32>
    %123 = vector.extract_strided_slice %122 {offsets = [3, 0], sizes = [1, 64], strides = [1, 1]} : vector<4x64xf32> to vector<1x64xf32>
    %124 = vector.broadcast %123 : vector<1x64xf32> to vector<8x64xf32>
    %125 = arith.mulf %119, %124 : vector<8x64xf32>
    %cst_38 = arith.constant 0.000000e+00 : f32
    %126 = vector.broadcast %cst_38 : f32 to vector<3x64xf32>
    %127 = tpu.concatenate %126, %119 in 0 : vector<3x64xf32>, vector<8x64xf32> -> vector<11x64xf32>
    %128 = vector.extract_strided_slice %127 {offsets = [2, 0], sizes = [8, 64], strides = [1, 1]} : vector<11x64xf32> to vector<8x64xf32>
    %cst_39 = arith.constant 0.000000e+00 : f32
    %129 = vector.shape_cast %73 : vector<8x1xi1> to vector<8x1xi1>
    %130 = vector.broadcast %129 : vector<8x1xi1> to vector<8x64xi1>
    %131 = vector.broadcast %cst_39 : f32 to vector<8x64xf32>
    %132 = arith.select %130, %128, %131 : vector<8x64xi1>, vector<8x64xf32>
    %133 = vector.extract_strided_slice %122 {offsets = [2, 0], sizes = [1, 64], strides = [1, 1]} : vector<4x64xf32> to vector<1x64xf32>
    %134 = vector.broadcast %133 : vector<1x64xf32> to vector<8x64xf32>
    %135 = arith.mulf %132, %134 : vector<8x64xf32>
    %136 = arith.addf %125, %135 : vector<8x64xf32>
    %137 = vector.extract_strided_slice %127 {offsets = [1, 0], sizes = [8, 64], strides = [1, 1]} : vector<11x64xf32> to vector<8x64xf32>
    %cst_40 = arith.constant 0.000000e+00 : f32
    %138 = vector.shape_cast %84 : vector<8x1xi1> to vector<8x1xi1>
    %139 = vector.broadcast %138 : vector<8x1xi1> to vector<8x64xi1>
    %140 = vector.broadcast %cst_40 : f32 to vector<8x64xf32>
    %141 = arith.select %139, %137, %140 : vector<8x64xi1>, vector<8x64xf32>
    %142 = vector.extract_strided_slice %122 {offsets = [1, 0], sizes = [1, 64], strides = [1, 1]} : vector<4x64xf32> to vector<1x64xf32>
    %143 = vector.broadcast %142 : vector<1x64xf32> to vector<8x64xf32>
    %144 = arith.mulf %141, %143 : vector<8x64xf32>
    %145 = arith.addf %136, %144 : vector<8x64xf32>
    %146 = vector.extract_strided_slice %127 {offsets = [0, 0], sizes = [8, 64], strides = [1, 1]} : vector<11x64xf32> to vector<8x64xf32>
    %cst_41 = arith.constant 0.000000e+00 : f32
    %147 = vector.shape_cast %95 : vector<8x1xi1> to vector<8x1xi1>
    %148 = vector.broadcast %147 : vector<8x1xi1> to vector<8x64xi1>
    %149 = vector.broadcast %cst_41 : f32 to vector<8x64xf32>
    %150 = arith.select %148, %146, %149 : vector<8x64xi1>, vector<8x64xf32>
    %151 = vector.extract_strided_slice %122 {offsets = [0, 0], sizes = [1, 64], strides = [1, 1]} : vector<4x64xf32> to vector<1x64xf32>
    %152 = vector.broadcast %151 : vector<1x64xf32> to vector<8x64xf32>
    %153 = arith.mulf %150, %152 : vector<8x64xf32>
    %154 = arith.addf %145, %153 : vector<8x64xf32>
    %c176 = arith.constant 176 : index
    %c0_42 = arith.constant 0 : index
    %155 = vector.load %arg1[%c176, %c0_42] : memref<504x128xf32, #tpu.memory_space<vmem>>, vector<1x64xf32>
    %156 = vector.broadcast %155 : vector<1x64xf32> to vector<8x64xf32>
    %157 = arith.addf %154, %156 : vector<8x64xf32>
    %158 = arith.negf %157 : vector<8x64xf32>
    %159 = math.exp %158 : vector<8x64xf32>
    %cst_43 = arith.constant 1.000000e+00 : f32
    %160 = vector.broadcast %cst_43 : f32 to vector<8x64xf32>
    %161 = arith.addf %160, %159 : vector<8x64xf32>
    %162 = arith.divf %160, %161 : vector<8x64xf32>
    %163 = arith.mulf %157, %162 : vector<8x64xf32>
    %c184 = arith.constant 184 : index
    %c0_44 = arith.constant 0 : index
    %164 = vector.load %arg1[%c184, %c0_44] : memref<504x128xf32, #tpu.memory_space<vmem>>, vector<16x64xf32>
    %cst_45 = arith.constant dense<0.000000e+00> : vector<16x8xf32>
    %165 = tpu.matmul %164, %163, %cst_45 {dimension_numbers = #tpu.dot_dimension_numbers<[1], [1], [0], [0], [0, 0, 1, 0], [], []>} : vector<16x64xf32>, vector<8x64xf32>, vector<16x8xf32> -> vector<16x8xf32>
    %c200 = arith.constant 200 : index
    %c0_46 = arith.constant 0 : index
    %166 = vector.load %arg1[%c200, %c0_46] : memref<504x128xf32, #tpu.memory_space<vmem>>, vector<16x64xf32>
    %cst_47 = arith.constant dense<0.000000e+00> : vector<16x8xf32>
    %167 = tpu.matmul %166, %163, %cst_47 {dimension_numbers = #tpu.dot_dimension_numbers<[1], [1], [0], [0], [0, 0, 1, 0], [], []>} : vector<16x64xf32>, vector<8x64xf32>, vector<16x8xf32> -> vector<16x8xf32>
    %c216 = arith.constant 216 : index
    %c0_48 = arith.constant 0 : index
    %168 = vector.load %arg1[%c216, %c0_48] : memref<504x128xf32, #tpu.memory_space<vmem>>, vector<64x64xf32>
    %cst_49 = arith.constant dense<0.000000e+00> : vector<8x64xf32>
    %169 = tpu.matmul %163, %168, %cst_49 {dimension_numbers = #tpu.dot_dimension_numbers<[1], [0], [0], [1], [0, 0, 1, 1], [], []>} : vector<8x64xf32>, vector<64x64xf32>, vector<8x64xf32> -> vector<8x64xf32>
    %c280 = arith.constant 280 : index
    %c0_50 = arith.constant 0 : index
    %170 = vector.load %arg1[%c280, %c0_50] : memref<504x128xf32, #tpu.memory_space<vmem>>, vector<1x64xf32>
    %171 = vector.broadcast %170 : vector<1x64xf32> to vector<8x64xf32>
    %172 = arith.addf %169, %171 : vector<8x64xf32>
    %cst_51 = arith.constant 0.000000e+00 : f32
    %173 = vector.broadcast %cst_51 : f32 to vector<8x64xf32>
    %174 = arith.maximumf %172, %173 : vector<8x64xf32>
    %175 = math.absf %172 : vector<8x64xf32>
    %cst_52 = arith.constant 0.000000e+00 : f32
    %176 = vector.broadcast %cst_52 : f32 to vector<8x64xf32>
    %177 = arith.subf %176, %175 : vector<8x64xf32>
    %178 = math.exp %177 : vector<8x64xf32>
    %cst_53 = arith.constant 1.000000e+00 : f32
    %179 = vector.broadcast %cst_53 : f32 to vector<8x64xf32>
    %180 = arith.addf %179, %178 : vector<8x64xf32>
    %181 = math.log %180 : vector<8x64xf32>
    %182 = arith.addf %174, %181 : vector<8x64xf32>
    %c288 = arith.constant 288 : index
    %c0_54 = arith.constant 0 : index
    %183 = vector.load %arg1[%c288, %c0_54] : memref<504x128xf32, #tpu.memory_space<vmem>>, vector<16x64xf32>
    %184 = arith.negf %121 : vector<8x64xf32>
    %185 = math.exp %184 : vector<8x64xf32>
    %cst_55 = arith.constant 1.000000e+00 : f32
    %186 = vector.broadcast %cst_55 : f32 to vector<8x64xf32>
    %187 = arith.addf %186, %185 : vector<8x64xf32>
    %188 = arith.divf %186, %187 : vector<8x64xf32>
    %189 = arith.mulf %121, %188 : vector<8x64xf32>
    %190 = arith.mulf %182, %163 : vector<8x64xf32>
    %c304 = arith.constant 304 : index
    %c0_56 = arith.constant 0 : index
    %191 = vector.load %arg1[%c304, %c0_56] : memref<504x128xf32, #tpu.memory_space<vmem>>, vector<1x64xf32>
    %192 = vector.broadcast %191 : vector<1x64xf32> to vector<8x64xf32>
    %193 = arith.mulf %163, %192 : vector<8x64xf32>
    %194 = vector.extract_strided_slice %165 {offsets = [0, 0], sizes = [16, 1], strides = [1, 1]} : vector<16x8xf32> to vector<16x1xf32>
    %195 = vector.extract_strided_slice %190 {offsets = [0, 0], sizes = [1, 64], strides = [1, 1]} : vector<8x64xf32> to vector<1x64xf32>
    %196 = vector.broadcast %194 : vector<16x1xf32> to vector<16x64xf32>
    %197 = vector.broadcast %195 : vector<1x64xf32> to vector<16x64xf32>
    %198 = arith.mulf %196, %197 : vector<16x64xf32>
    %199 = vector.extract_strided_slice %165 {offsets = [0, 1], sizes = [16, 1], strides = [1, 1]} : vector<16x8xf32> to vector<16x1xf32>
    %200 = vector.extract_strided_slice %190 {offsets = [1, 0], sizes = [1, 64], strides = [1, 1]} : vector<8x64xf32> to vector<1x64xf32>
    %201 = vector.broadcast %199 : vector<16x1xf32> to vector<16x64xf32>
    %202 = vector.broadcast %200 : vector<1x64xf32> to vector<16x64xf32>
    %203 = arith.mulf %201, %202 : vector<16x64xf32>
    %204 = vector.extract_strided_slice %165 {offsets = [0, 2], sizes = [16, 1], strides = [1, 1]} : vector<16x8xf32> to vector<16x1xf32>
    %205 = vector.extract_strided_slice %190 {offsets = [2, 0], sizes = [1, 64], strides = [1, 1]} : vector<8x64xf32> to vector<1x64xf32>
    %206 = vector.broadcast %204 : vector<16x1xf32> to vector<16x64xf32>
    %207 = vector.broadcast %205 : vector<1x64xf32> to vector<16x64xf32>
    %208 = arith.mulf %206, %207 : vector<16x64xf32>
    %209 = vector.extract_strided_slice %165 {offsets = [0, 3], sizes = [16, 1], strides = [1, 1]} : vector<16x8xf32> to vector<16x1xf32>
    %210 = vector.extract_strided_slice %190 {offsets = [3, 0], sizes = [1, 64], strides = [1, 1]} : vector<8x64xf32> to vector<1x64xf32>
    %211 = vector.broadcast %209 : vector<16x1xf32> to vector<16x64xf32>
    %212 = vector.broadcast %210 : vector<1x64xf32> to vector<16x64xf32>
    %213 = arith.mulf %211, %212 : vector<16x64xf32>
    %214 = vector.extract_strided_slice %182 {offsets = [1, 0], sizes = [1, 64], strides = [1, 1]} : vector<8x64xf32> to vector<1x64xf32>
    %215 = vector.broadcast %214 : vector<1x64xf32> to vector<16x64xf32>
    %216 = arith.mulf %183, %215 : vector<16x64xf32>
    %217 = math.exp %216 : vector<16x64xf32>
    %218 = vector.extract_strided_slice %182 {offsets = [2, 0], sizes = [1, 64], strides = [1, 1]} : vector<8x64xf32> to vector<1x64xf32>
    %219 = vector.broadcast %218 : vector<1x64xf32> to vector<16x64xf32>
    %220 = arith.mulf %183, %219 : vector<16x64xf32>
    %221 = math.exp %220 : vector<16x64xf32>
    %222 = vector.extract_strided_slice %182 {offsets = [3, 0], sizes = [1, 64], strides = [1, 1]} : vector<8x64xf32> to vector<1x64xf32>
    %223 = vector.broadcast %222 : vector<1x64xf32> to vector<16x64xf32>
    %224 = arith.mulf %183, %223 : vector<16x64xf32>
    %225 = math.exp %224 : vector<16x64xf32>
    %226 = arith.mulf %217, %198 : vector<16x64xf32>
    %227 = arith.addf %226, %203 : vector<16x64xf32>
    %228 = arith.mulf %221, %227 : vector<16x64xf32>
    %229 = arith.addf %228, %208 : vector<16x64xf32>
    %230 = arith.mulf %225, %229 : vector<16x64xf32>
    %231 = arith.addf %230, %213 : vector<16x64xf32>
    %232 = vector.extract_strided_slice %167 {offsets = [0, 0], sizes = [16, 1], strides = [1, 1]} : vector<16x8xf32> to vector<16x1xf32>
    %233 = vector.broadcast %232 : vector<16x1xf32> to vector<16x64xf32>
    %234 = arith.mulf %233, %198 : vector<16x64xf32>
    %cst_57 = arith.constant dense<0.000000e+00> : vector<64xf32>
    %235 = vector.multi_reduction <add>, %234, %cst_57 [0] : vector<16x64xf32> to vector<64xf32>
    %236 = vector.shape_cast %235 : vector<64xf32> to vector<1x64xf32>
    %237 = vector.extract_strided_slice %167 {offsets = [0, 1], sizes = [16, 1], strides = [1, 1]} : vector<16x8xf32> to vector<16x1xf32>
    %238 = vector.broadcast %237 : vector<16x1xf32> to vector<16x64xf32>
    %239 = arith.mulf %238, %227 : vector<16x64xf32>
    %cst_58 = arith.constant dense<0.000000e+00> : vector<64xf32>
    %240 = vector.multi_reduction <add>, %239, %cst_58 [0] : vector<16x64xf32> to vector<64xf32>
    %241 = vector.shape_cast %240 : vector<64xf32> to vector<1x64xf32>
    %242 = vector.extract_strided_slice %167 {offsets = [0, 2], sizes = [16, 1], strides = [1, 1]} : vector<16x8xf32> to vector<16x1xf32>
    %243 = vector.broadcast %242 : vector<16x1xf32> to vector<16x64xf32>
    %244 = arith.mulf %243, %229 : vector<16x64xf32>
    %cst_59 = arith.constant dense<0.000000e+00> : vector<64xf32>
    %245 = vector.multi_reduction <add>, %244, %cst_59 [0] : vector<16x64xf32> to vector<64xf32>
    %246 = vector.shape_cast %245 : vector<64xf32> to vector<1x64xf32>
    %247 = vector.extract_strided_slice %167 {offsets = [0, 3], sizes = [16, 1], strides = [1, 1]} : vector<16x8xf32> to vector<16x1xf32>
    %248 = vector.broadcast %247 : vector<16x1xf32> to vector<16x64xf32>
    %249 = arith.mulf %248, %231 : vector<16x64xf32>
    %cst_60 = arith.constant dense<0.000000e+00> : vector<64xf32>
    %250 = vector.multi_reduction <add>, %249, %cst_60 [0] : vector<16x64xf32> to vector<64xf32>
    %251 = vector.shape_cast %250 : vector<64xf32> to vector<1x64xf32>
    %252 = vector.extract_strided_slice %165 {offsets = [0, 4], sizes = [16, 1], strides = [1, 1]} : vector<16x8xf32> to vector<16x1xf32>
    %253 = vector.extract_strided_slice %190 {offsets = [4, 0], sizes = [1, 64], strides = [1, 1]} : vector<8x64xf32> to vector<1x64xf32>
    %254 = vector.broadcast %252 : vector<16x1xf32> to vector<16x64xf32>
    %255 = vector.broadcast %253 : vector<1x64xf32> to vector<16x64xf32>
    %256 = arith.mulf %254, %255 : vector<16x64xf32>
    %257 = vector.extract_strided_slice %165 {offsets = [0, 5], sizes = [16, 1], strides = [1, 1]} : vector<16x8xf32> to vector<16x1xf32>
    %258 = vector.extract_strided_slice %190 {offsets = [5, 0], sizes = [1, 64], strides = [1, 1]} : vector<8x64xf32> to vector<1x64xf32>
    %259 = vector.broadcast %257 : vector<16x1xf32> to vector<16x64xf32>
    %260 = vector.broadcast %258 : vector<1x64xf32> to vector<16x64xf32>
    %261 = arith.mulf %259, %260 : vector<16x64xf32>
    %262 = vector.extract_strided_slice %165 {offsets = [0, 6], sizes = [16, 1], strides = [1, 1]} : vector<16x8xf32> to vector<16x1xf32>
    %263 = vector.extract_strided_slice %190 {offsets = [6, 0], sizes = [1, 64], strides = [1, 1]} : vector<8x64xf32> to vector<1x64xf32>
    %264 = vector.broadcast %262 : vector<16x1xf32> to vector<16x64xf32>
    %265 = vector.broadcast %263 : vector<1x64xf32> to vector<16x64xf32>
    %266 = arith.mulf %264, %265 : vector<16x64xf32>
    %267 = vector.extract_strided_slice %165 {offsets = [0, 7], sizes = [16, 1], strides = [1, 1]} : vector<16x8xf32> to vector<16x1xf32>
    %268 = vector.extract_strided_slice %190 {offsets = [7, 0], sizes = [1, 64], strides = [1, 1]} : vector<8x64xf32> to vector<1x64xf32>
    %269 = vector.broadcast %267 : vector<16x1xf32> to vector<16x64xf32>
    %270 = vector.broadcast %268 : vector<1x64xf32> to vector<16x64xf32>
    %271 = arith.mulf %269, %270 : vector<16x64xf32>
    %272 = vector.extract_strided_slice %182 {offsets = [5, 0], sizes = [1, 64], strides = [1, 1]} : vector<8x64xf32> to vector<1x64xf32>
    %273 = vector.broadcast %272 : vector<1x64xf32> to vector<16x64xf32>
    %274 = arith.mulf %183, %273 : vector<16x64xf32>
    %275 = math.exp %274 : vector<16x64xf32>
    %276 = vector.extract_strided_slice %182 {offsets = [6, 0], sizes = [1, 64], strides = [1, 1]} : vector<8x64xf32> to vector<1x64xf32>
    %277 = vector.broadcast %276 : vector<1x64xf32> to vector<16x64xf32>
    %278 = arith.mulf %183, %277 : vector<16x64xf32>
    %279 = math.exp %278 : vector<16x64xf32>
    %280 = vector.extract_strided_slice %182 {offsets = [7, 0], sizes = [1, 64], strides = [1, 1]} : vector<8x64xf32> to vector<1x64xf32>
    %281 = vector.broadcast %280 : vector<1x64xf32> to vector<16x64xf32>
    %282 = arith.mulf %183, %281 : vector<16x64xf32>
    %283 = math.exp %282 : vector<16x64xf32>
    %284 = arith.mulf %275, %256 : vector<16x64xf32>
    %285 = arith.addf %284, %261 : vector<16x64xf32>
    %286 = arith.mulf %279, %285 : vector<16x64xf32>
    %287 = arith.addf %286, %266 : vector<16x64xf32>
    %288 = arith.mulf %283, %287 : vector<16x64xf32>
    %289 = arith.addf %288, %271 : vector<16x64xf32>
    %290 = vector.extract_strided_slice %167 {offsets = [0, 4], sizes = [16, 1], strides = [1, 1]} : vector<16x8xf32> to vector<16x1xf32>
    %291 = vector.broadcast %290 : vector<16x1xf32> to vector<16x64xf32>
    %292 = arith.mulf %291, %256 : vector<16x64xf32>
    %cst_61 = arith.constant dense<0.000000e+00> : vector<64xf32>
    %293 = vector.multi_reduction <add>, %292, %cst_61 [0] : vector<16x64xf32> to vector<64xf32>
    %294 = vector.shape_cast %293 : vector<64xf32> to vector<1x64xf32>
    %295 = vector.extract_strided_slice %167 {offsets = [0, 5], sizes = [16, 1], strides = [1, 1]} : vector<16x8xf32> to vector<16x1xf32>
    %296 = vector.broadcast %295 : vector<16x1xf32> to vector<16x64xf32>
    %297 = arith.mulf %296, %285 : vector<16x64xf32>
    %cst_62 = arith.constant dense<0.000000e+00> : vector<64xf32>
    %298 = vector.multi_reduction <add>, %297, %cst_62 [0] : vector<16x64xf32> to vector<64xf32>
    %299 = vector.shape_cast %298 : vector<64xf32> to vector<1x64xf32>
    %300 = vector.extract_strided_slice %167 {offsets = [0, 6], sizes = [16, 1], strides = [1, 1]} : vector<16x8xf32> to vector<16x1xf32>
    %301 = vector.broadcast %300 : vector<16x1xf32> to vector<16x64xf32>
    %302 = arith.mulf %301, %287 : vector<16x64xf32>
    %cst_63 = arith.constant dense<0.000000e+00> : vector<64xf32>
    %303 = vector.multi_reduction <add>, %302, %cst_63 [0] : vector<16x64xf32> to vector<64xf32>
    %304 = vector.shape_cast %303 : vector<64xf32> to vector<1x64xf32>
    %305 = vector.extract_strided_slice %167 {offsets = [0, 7], sizes = [16, 1], strides = [1, 1]} : vector<16x8xf32> to vector<16x1xf32>
    %306 = vector.broadcast %305 : vector<16x1xf32> to vector<16x64xf32>
    %307 = arith.mulf %306, %289 : vector<16x64xf32>
    %cst_64 = arith.constant dense<0.000000e+00> : vector<64xf32>
    %308 = vector.multi_reduction <add>, %307, %cst_64 [0] : vector<16x64xf32> to vector<64xf32>
    %309 = vector.shape_cast %308 : vector<64xf32> to vector<1x64xf32>
    %310 = tpu.concatenate %236, %241, %246, %251, %294, %299, %304, %309 in 0 : vector<1x64xf32>, vector<1x64xf32>, vector<1x64xf32>, vector<1x64xf32>, vector<1x64xf32>, vector<1x64xf32>, vector<1x64xf32>, vector<1x64xf32> -> vector<8x64xf32>
    %311 = arith.addf %310, %193 : vector<8x64xf32>
    %312 = arith.mulf %311, %189 : vector<8x64xf32>
    %c312 = arith.constant 312 : index
    %c0_65 = arith.constant 0 : index
    %313 = vector.load %arg1[%c312, %c0_65] : memref<504x128xf32, #tpu.memory_space<vmem>>, vector<64x32xf32>
    %cst_66 = arith.constant dense<0.000000e+00> : vector<8x32xf32>
    %314 = tpu.matmul %312, %313, %cst_66 {dimension_numbers = #tpu.dot_dimension_numbers<[1], [0], [0], [1], [0, 0, 1, 1], [], []>} : vector<8x64xf32>, vector<64x32xf32>, vector<8x32xf32> -> vector<8x32xf32>
    %315 = arith.addf %61, %314 : vector<8x32xf32>
    %c376 = arith.constant 376 : index
    %c0_67 = arith.constant 0 : index
    %316 = vector.load %arg1[%c376, %c0_67] : memref<504x128xf32, #tpu.memory_space<vmem>>, vector<1x32xf32>
    %c384 = arith.constant 384 : index
    %c0_68 = arith.constant 0 : index
    %317 = vector.load %arg1[%c384, %c0_68] : memref<504x128xf32, #tpu.memory_space<vmem>>, vector<1x32xf32>
    %cst_69 = arith.constant dense<0.000000e+00> : vector<8xf32>
    %318 = vector.multi_reduction <add>, %315, %cst_69 [1] : vector<8x32xf32> to vector<8xf32>
    %319 = vector.shape_cast %318 : vector<8xf32> to vector<8x1xf32>
    %cst_70 = arith.constant 3.200000e+01 : f32
    %320 = vector.broadcast %cst_70 : f32 to vector<8x1xf32>
    %321 = arith.divf %319, %320 : vector<8x1xf32>
    %322 = vector.broadcast %321 : vector<8x1xf32> to vector<8x32xf32>
    %323 = arith.subf %315, %322 : vector<8x32xf32>
    %324 = arith.mulf %323, %323 : vector<8x32xf32>
    %cst_71 = arith.constant dense<0.000000e+00> : vector<8xf32>
    %325 = vector.multi_reduction <add>, %324, %cst_71 [1] : vector<8x32xf32> to vector<8xf32>
    %326 = vector.shape_cast %325 : vector<8xf32> to vector<8x1xf32>
    %cst_72 = arith.constant 3.200000e+01 : f32
    %327 = vector.broadcast %cst_72 : f32 to vector<8x1xf32>
    %328 = arith.divf %326, %327 : vector<8x1xf32>
    %cst_73 = arith.constant 9.99999974E-6 : f32
    %329 = vector.broadcast %cst_73 : f32 to vector<8x1xf32>
    %330 = arith.addf %328, %329 : vector<8x1xf32>
    %331 = math.rsqrt %330 : vector<8x1xf32>
    %332 = vector.broadcast %331 : vector<8x1xf32> to vector<8x32xf32>
    %333 = arith.mulf %323, %332 : vector<8x32xf32>
    %334 = vector.broadcast %316 : vector<1x32xf32> to vector<8x32xf32>
    %335 = arith.mulf %333, %334 : vector<8x32xf32>
    %336 = vector.broadcast %317 : vector<1x32xf32> to vector<8x32xf32>
    %337 = arith.addf %335, %336 : vector<8x32xf32>
    %c392 = arith.constant 392 : index
    %c0_74 = arith.constant 0 : index
    %338 = vector.load %arg1[%c392, %c0_74] : memref<504x128xf32, #tpu.memory_space<vmem>>, vector<32x64xf32>
    %cst_75 = arith.constant dense<0.000000e+00> : vector<8x64xf32>
    %339 = tpu.matmul %337, %338, %cst_75 {dimension_numbers = #tpu.dot_dimension_numbers<[1], [0], [0], [1], [0, 0, 1, 1], [], []>} : vector<8x32xf32>, vector<32x64xf32>, vector<8x64xf32> -> vector<8x64xf32>
    %c424 = arith.constant 424 : index
    %c0_76 = arith.constant 0 : index
    %340 = vector.load %arg1[%c424, %c0_76] : memref<504x128xf32, #tpu.memory_space<vmem>>, vector<1x64xf32>
    %341 = vector.broadcast %340 : vector<1x64xf32> to vector<8x64xf32>
    %342 = arith.addf %339, %341 : vector<8x64xf32>
    %343 = arith.mulf %342, %342 : vector<8x64xf32>
    %344 = arith.mulf %342, %343 : vector<8x64xf32>
    %cst_77 = arith.constant 4.471500e-02 : f32
    %345 = vector.broadcast %cst_77 : f32 to vector<8x64xf32>
    %346 = arith.mulf %345, %344 : vector<8x64xf32>
    %347 = arith.addf %342, %346 : vector<8x64xf32>
    %cst_78 = arith.constant 0.797884583 : f32
    %348 = vector.broadcast %cst_78 : f32 to vector<8x64xf32>
    %349 = arith.mulf %348, %347 : vector<8x64xf32>
    %350 = math.tanh %349 : vector<8x64xf32>
    %cst_79 = arith.constant 1.000000e+00 : f32
    %351 = vector.broadcast %cst_79 : f32 to vector<8x64xf32>
    %352 = arith.addf %351, %350 : vector<8x64xf32>
    %cst_80 = arith.constant 5.000000e-01 : f32
    %353 = vector.broadcast %cst_80 : f32 to vector<8x64xf32>
    %354 = arith.mulf %353, %352 : vector<8x64xf32>
    %355 = arith.mulf %342, %354 : vector<8x64xf32>
    %c432 = arith.constant 432 : index
    %c0_81 = arith.constant 0 : index
    %356 = vector.load %arg1[%c432, %c0_81] : memref<504x128xf32, #tpu.memory_space<vmem>>, vector<64x32xf32>
    %cst_82 = arith.constant dense<0.000000e+00> : vector<8x32xf32>
    %357 = tpu.matmul %355, %356, %cst_82 {dimension_numbers = #tpu.dot_dimension_numbers<[1], [0], [0], [1], [0, 0, 1, 1], [], []>} : vector<8x64xf32>, vector<64x32xf32>, vector<8x32xf32> -> vector<8x32xf32>
    %c496 = arith.constant 496 : index
    %c0_83 = arith.constant 0 : index
    %358 = vector.load %arg1[%c496, %c0_83] : memref<504x128xf32, #tpu.memory_space<vmem>>, vector<1x32xf32>
    %359 = vector.broadcast %358 : vector<1x32xf32> to vector<8x32xf32>
    %360 = arith.addf %357, %359 : vector<8x32xf32>
    %361 = arith.addf %315, %360 : vector<8x32xf32>
    %c56 = arith.constant 56 : index
    %c0_84 = arith.constant 0 : index
    %362 = vector.load %arg1[%c56, %c0_84] : memref<504x128xf32, #tpu.memory_space<vmem>>, vector<1x32xf32>
    %c64 = arith.constant 64 : index
    %c0_85 = arith.constant 0 : index
    %363 = vector.load %arg1[%c64, %c0_85] : memref<504x128xf32, #tpu.memory_space<vmem>>, vector<1x32xf32>
    %cst_86 = arith.constant dense<0.000000e+00> : vector<8xf32>
    %364 = vector.multi_reduction <add>, %361, %cst_86 [1] : vector<8x32xf32> to vector<8xf32>
    %365 = vector.shape_cast %364 : vector<8xf32> to vector<8x1xf32>
    %cst_87 = arith.constant 3.200000e+01 : f32
    %366 = vector.broadcast %cst_87 : f32 to vector<8x1xf32>
    %367 = arith.divf %365, %366 : vector<8x1xf32>
    %368 = vector.broadcast %367 : vector<8x1xf32> to vector<8x32xf32>
    %369 = arith.subf %361, %368 : vector<8x32xf32>
    %370 = arith.mulf %369, %369 : vector<8x32xf32>
    %cst_88 = arith.constant dense<0.000000e+00> : vector<8xf32>
    %371 = vector.multi_reduction <add>, %370, %cst_88 [1] : vector<8x32xf32> to vector<8xf32>
    %372 = vector.shape_cast %371 : vector<8xf32> to vector<8x1xf32>
    %cst_89 = arith.constant 3.200000e+01 : f32
    %373 = vector.broadcast %cst_89 : f32 to vector<8x1xf32>
    %374 = arith.divf %372, %373 : vector<8x1xf32>
    %cst_90 = arith.constant 9.99999974E-6 : f32
    %375 = vector.broadcast %cst_90 : f32 to vector<8x1xf32>
    %376 = arith.addf %374, %375 : vector<8x1xf32>
    %377 = math.rsqrt %376 : vector<8x1xf32>
    %378 = vector.broadcast %377 : vector<8x1xf32> to vector<8x32xf32>
    %379 = arith.mulf %369, %378 : vector<8x32xf32>
    %380 = vector.broadcast %362 : vector<1x32xf32> to vector<8x32xf32>
    %381 = arith.mulf %379, %380 : vector<8x32xf32>
    %382 = vector.broadcast %363 : vector<1x32xf32> to vector<8x32xf32>
    %383 = arith.addf %381, %382 : vector<8x32xf32>
    %c72 = arith.constant 72 : index
    %c0_91 = arith.constant 0 : index
    %384 = vector.load %arg1[%c72, %c0_91] : memref<504x128xf32, #tpu.memory_space<vmem>>, vector<8x32xf32>
    %cst_92 = arith.constant dense<0.000000e+00> : vector<8x8xf32>
    %385 = tpu.matmul %384, %383, %cst_92 {dimension_numbers = #tpu.dot_dimension_numbers<[1], [1], [0], [0], [0, 0, 1, 0], [], []>} : vector<8x32xf32>, vector<8x32xf32>, vector<8x8xf32> -> vector<8x8xf32>
    %c80 = arith.constant 80 : index
    %c0_93 = arith.constant 0 : index
    %386 = vector.load %arg1[%c80, %c0_93] : memref<504x128xf32, #tpu.memory_space<vmem>>, vector<8x1xf32>
    %387 = vector.broadcast %386 : vector<8x1xf32> to vector<8x8xf32>
    %388 = arith.addf %385, %387 : vector<8x8xf32>
    %389 = vector.extract_strided_slice %388 {offsets = [0, 0], sizes = [8, 4], strides = [1, 1]} : vector<8x8xf32> to vector<8x4xf32>
    %390 = vector.broadcast %1 : vector<1x4xf32> to vector<8x4xf32>
    %391 = arith.subf %389, %390 : vector<8x4xf32>
    %cst_94 = arith.constant 1.000000e-10 : f32
    %392 = vector.broadcast %cst_94 : f32 to vector<1x4xf32>
    %393 = arith.addf %0, %392 : vector<1x4xf32>
    %394 = vector.broadcast %393 : vector<1x4xf32> to vector<8x4xf32>
    %395 = arith.divf %391, %394 : vector<8x4xf32>
    %396 = vector.broadcast %24 : vector<1x4xf32> to vector<8x4xf32>
    %397 = arith.mulf %395, %396 : vector<8x4xf32>
    %398 = vector.broadcast %14 : vector<1x4xf32> to vector<8x4xf32>
    %399 = arith.addf %397, %398 : vector<8x4xf32>
    %c0_95 = arith.constant 0 : index
    %c0_96 = arith.constant 0 : index
    %c0_97 = arith.constant 0 : index
    %400 = vector.load %arg2[%c0_95, %c0_96, %c0_97] : memref<2x8x4xf32, #tpu.memory_space<vmem>>, vector<1x8x4xf32>
    %401 = vector.shape_cast %400 : vector<1x8x4xf32> to vector<8x4xf32>
    %402 = vector.shape_cast %399 : vector<8x4xf32> to vector<1x8x4xf32>
    tpu.vector_store %arg2[%c0_95, %c0_96, %c0_97], %402 {strides = array<i32>} : memref<2x8x4xf32, #tpu.memory_space<vmem>>, vector<1x8x4xf32>,
    %403 = vector.extract_strided_slice %388 {offsets = [0, 4], sizes = [8, 4], strides = [1, 1]} : vector<8x8xf32> to vector<8x4xf32>
    %404 = vector.broadcast %1 : vector<1x4xf32> to vector<8x4xf32>
    %405 = arith.subf %403, %404 : vector<8x4xf32>
    %cst_98 = arith.constant 1.000000e-10 : f32
    %406 = vector.broadcast %cst_98 : f32 to vector<1x4xf32>
    %407 = arith.addf %0, %406 : vector<1x4xf32>
    %408 = vector.broadcast %407 : vector<1x4xf32> to vector<8x4xf32>
    %409 = arith.divf %405, %408 : vector<8x4xf32>
    %410 = vector.broadcast %50 : vector<1x4xf32> to vector<8x4xf32>
    %411 = arith.mulf %409, %410 : vector<8x4xf32>
    %412 = vector.broadcast %40 : vector<1x4xf32> to vector<8x4xf32>
    %413 = arith.addf %411, %412 : vector<8x4xf32>
    %c1_99 = arith.constant 1 : index
    %c0_100 = arith.constant 0 : index
    %c0_101 = arith.constant 0 : index
    %414 = vector.load %arg2[%c1_99, %c0_100, %c0_101] : memref<2x8x4xf32, #tpu.memory_space<vmem>>, vector<1x8x4xf32>
    %415 = vector.shape_cast %414 : vector<1x8x4xf32> to vector<8x4xf32>
    %416 = vector.shape_cast %413 : vector<8x4xf32> to vector<1x8x4xf32>
    tpu.vector_store %arg2[%c1_99, %c0_100, %c0_101], %416 {strides = array<i32>} : memref<2x8x4xf32, #tpu.memory_space<vmem>>, vector<1x8x4xf32>,
    return
  }
}

</mosaic_0001>

<llo_original>
// kernel: timesmamba_forward.1
$region0: #{timesmamba_forward.1}
  #allocation0 [shape = 'u32[]', space=smem, size = 0x4, offset = 0x4, fixed_abs, tag = 'smem constant byte address 0x4 - core index']
  #allocation1 [shape = 'u32[72,128]{1,0:T(1,128)}', space=vmem, size = 0x9000, scoped, tag = 'internal scratch']
  %s0 = inlined_call_operand.vmem [shape: f32[2,16,4], index: 0, kind: input, shape index: {}]
  %s1 = inlined_call_operand.hbm [shape: f32[504,128], index: 1, kind: input, shape index: {}]
  %s2 = inlined_call_operand.vmem [shape: f32[2,8,4], index: 2, kind: output, shape index: {}]
  %s3 = sld [smem:[#allocation0]]
  $region22: #{timesmamba_forward.1} parent=0
    _
  %s5 = ssub.s32 1, %s3
  %s6 = scalar_select 0, %s5, %s3
  $region1: #{timesmamba_forward.1} parent=0
    #allocation2 [shape = 'u8[258048]{0}', space=vmem, size = 0x3f000, scoped, tag = 'input window, operand 1, single buffered']
    #allocation3 [shape = 's32[1]{0}', space=sflag, size = 0x4, scoped, tag = 'scoped memory for timesmamba_forward.1']
    %7 = vsyncpa [#allocation3], 0
    // Predicated region
    $region2: #{timesmamba_forward.1} parent=1 // pred_check
      _
    $region3: #{timesmamba_forward.1} parent=1 // pred_check_branch
      %9 = sbr.rel (0) target = $region5
    $region4: #{timesmamba_forward.1} parent=1 // pred_region
      _
    $region5: #{timesmamba_forward.1} parent=1 // pred_fallthru
      _
    // Predicated region
    $region6: #{timesmamba_forward.1} parent=1 // pred_check
      _
    $region7: #{timesmamba_forward.1} parent=1 // pred_check_branch
      %11 = sbr.rel (0) target = $region9
    $region8: #{timesmamba_forward.1} parent=1 // pred_region
      %13 = vsyncadd [#allocation3], 0
      %s14 = sshll.u32 %s1, 4
      %s15 = int_to_ptr.hbm [resolvable:$true] %s14
      %s16 = sshll.u32 [#allocation2], 4
      %s17 = int_to_ptr.vmem [resolvable:$true] %s16
      %22 = dma.hbm_to_vmem [thread:$0]  %s15, 8064, %s17, [#allocation3], 128, 128, 8
    $region9: #{timesmamba_forward.1} parent=1 // pred_fallthru
      _
    // Predicated region
    $region10: #{timesmamba_forward.1} parent=1 // pred_check
      _
    $region11: #{timesmamba_forward.1} parent=1 // pred_check_branch
      %24 = sbr.rel (0) target = $region13
    $region12: #{timesmamba_forward.1} parent=1 // pred_region
      %26 = dma.done [#allocation3], 8064
    $region13: #{timesmamba_forward.1} parent=1 // pred_fallthru
      _
    %v27 = vld [vmem:[#allocation2] sm:$0x1]
    %v28 = vld [vmem:[#allocation2 + $0x8] sm:$0x1]
    %v29 = vld [vmem:[#allocation2 + $0x10] sm:$0xff]
    %v30 = vld [vmem:[#allocation2 + $0x18] sm:$0xff]
    %v31 = vld [vmem:[#allocation2 + $0x20] sm:$0xff]
    %v32 = vld [vmem:[#allocation2 + $0x28] sm:$0xff]
    %v33 = vld [vmem:[#allocation2 + $0x30] sm:$0x1]
    %v34 = vlaneseq
    %v35 = vshrl.u32 %v34, 7
    %v36 = vlaneseq
    %v37 = vand.u32 %v36, 127
    %vm38 = vcmp.eq.s32.totalorder %v35, %v37
    %v39 = vsel %vm38, 1, 0
    %v40 = vcvt.s32.f32 %v39
    %v41 = vld [vmem:[%s0] sm:$0xff]
    %v42 = vld [vmem:[%s0 + $0x8] sm:$0xff]
    %vm43 = vcmask 31744
    %v44 = vsel %vm43, %v41, 0.0
    %v45 = vsel %vm43, %v42, 0.0
    %v46 = vadd.f32 %v44, %v45
    %v47 = vrot.slane %v46, 4
    %v48 = vadd.f32 %v46, %v47
    %v49 = vrot.slane %v48, 2
    %v50 = vadd.f32 %v48, %v49
    %v51 = vrot.slane %v50, 1
    %v52 = vadd.f32 %v50, %v51
    %v53 = vrcp.pop 16.0
    %v54 = vmul.f32 16.0, %v53
    %v55 = vsub.f32 1.0, %v54
    %v56 = vmul.f32 %v53, %v55
    %v57 = vadd.f32 %v53, %v56
    %vm58 = vweird.f32 %v53
    %v59 = vsel %vm58, %v53, %v57
    %v60 = vmul.f32 %v52, %v59
    %v61 = vsub.f32 %v41, %v60
    %v62 = vsub.f32 %v42, %v60
    %v63 = vmul.f32 %v61, %v61
    %v64 = vmul.f32 %v62, %v62
    %v65 = vsel %vm43, %v63, 0.0
    %v66 = vsel %vm43, %v64, 0.0
    %v67 = vadd.f32 %v65, %v66
    %v68 = vrot.slane %v67, 4
    %v69 = vadd.f32 %v67, %v68
    %v70 = vrot.slane %v69, 2
    %v71 = vadd.f32 %v69, %v70
    %v72 = vrot.slane %v71, 1
    %v73 = vadd.f32 %v71, %v72
    %v74 = vmul.f32 %v73, %v59
    %v75 = vadd.f32 %v74, 1e-05
    %v76 = vrsqrt.pop %v75
    %v77 = vmul.f32 %v76, %v75
    %v78 = vmul.f32 %v77, %v76
    %v79 = vmul.f32 0.5, %v78
    %v80 = vsub.f32 1.5, %v79
    %v81 = vmul.f32 %v76, %v80
    %v82 = vmul.f32 %v75, %v81
    %vm83 = vcmp.eq.f32.partialorder %v75, inf
    %v84 = vsel %vm83, %v75, %v82
    %vm85 = vcmp.eq.f32.partialorder %v75, 0.0
    %v86 = vand.u32 %v75, 2147483648
    %v87 = vsel %vm85, %v86, %v84
    %v88 = vrcp.pop %v87
    %v89 = vmul.f32 %v87, %v88
    %v90 = vsub.f32 1.0, %v89
    %v91 = vmul.f32 %v88, %v90
    %v92 = vadd.f32 %v88, %v91
    %vm93 = vweird.f32 %v87
    %vm94 = vweird.f32 %v88
    %vm95 = vmor %vm93, %vm94
    %v96 = vsel %vm95, %v88, %v92
    %v97 = vand.u32 2147483647, %v87
    %vm98 = vcmp.eq.f32.partialorder %v97, 8.507059e+37
    %v99 = vand.u32 %v87, 2147483648
    %v100 = vor.u32 1.1754944e-38, %v99
    %v101 = vsel %vm98, %v100, %v96
    %v102 = vmul.f32 %v61, %v101
    %v103 = vmul.f32 %v62, %v101
    %v104 = vperm.slane %v27, 0
    %v105 = vmul.f32 %v102, %v104
    %v106 = vmul.f32 %v103, %v104
    %v107 = vperm.slane %v28, 0
    %v108 = vadd.f32 %v105, %v107
    %v109 = vadd.f32 %v106, %v107
    %vm110 = vcmask 130048
    %v112 = vsel %vm110, %v29, 0
    %v115 = vsel %vm110, %v30, 0
    %v118 = vsel %vm110, %v31, 0
    %v121 = vsel %vm110, %v32, 0
    %123 = vmatpush.msra.mxu0 0.0
    %124 = vmatpush.msra.mxu0 0.0
    %125 = vmatpush.msra.mxu0 0.0
    %126 = vmatpush.msra.mxu0 0.0
    %127 = vmatpush.msra.mxu0 0.0
    %128 = vmatpush.msra.mxu0 0.0
    %129 = vmatpush.msra.mxu0 0.0
    %130 = vmatpush.msra.mxu0 0.0
    %131 = vmatpush.msra.mxu0 0.0
    %132 = vmatpush.msra.mxu0 0.0
    %133 = vmatpush.msra.mxu0 0.0
    %134 = vmatpush.msra.mxu0 0.0
    %135 = vmatpush.msra.mxu0 0.0
    %136 = vmatpush.msra.mxu0 0.0
    %137 = vmatpush.msra.mxu0 %v109
    %138 = vmatpush.msra.mxu0 %v108
    %139 = vmatmul.f32.gmra.mxu0 %v112
    %v140 = vpop.f32.mrf.mxu0
    %v141 = vadd.f32 0.0, %v140
    %142 = vmatmul.f32.gmra.mxu0 %v115
    %v143 = vpop.f32.mrf.mxu0
    %v144 = vadd.f32 0.0, %v143
    %145 = vmatmul.f32.gmra.mxu0 %v118
    %v146 = vpop.f32.mrf.mxu0
    %v147 = vadd.f32 0.0, %v146
    %148 = vmatmul.f32.gmra.mxu0 %v121
    %v149 = vpop.f32.mrf.mxu0
    %v150 = vadd.f32 0.0, %v149
    %151 = vdwg.mxu0
    %v152 = vperm.slane %v33, 0
    %v154 = vsel %vm43, %v40, 0
    %v157 = vsel %vm43, %v141, 0
    %v160 = vsel %vm43, %v144, 0
    %v163 = vsel %vm43, %v147, 0
    %v166 = vsel %vm43, %v150, 0
    %168 = vmatpush.xpose.msra.mxu0 0.0
    %169 = vmatpush.xpose.msra.mxu0 0.0
    %170 = vmatpush.xpose.msra.mxu0 0.0
    %171 = vmatpush.xpose.msra.mxu0 0.0
    %172 = vmatpush.xpose.msra.mxu0 0.0
    %173 = vmatpush.xpose.msra.mxu0 0.0
    %174 = vmatpush.xpose.msra.mxu0 0.0
    %175 = vmatpush.xpose.msra.mxu0 0.0
    %176 = vmatpush.xpose.msra.mxu0 0.0
    %177 = vmatpush.xpose.msra.mxu0 0.0
    %178 = vmatpush.xpose.msra.mxu0 0.0
    %179 = vmatpush.xpose.msra.mxu0 0.0
    %180 = vmatpush.xpose.msra.mxu0 %v166
    %181 = vmatpush.xpose.msra.mxu0 %v163
    %182 = vmatpush.xpose.msra.mxu0 %v160
    %183 = vmatpush.xpose.msra.mxu0 %v157
    %184 = vmatmul.f32.gmra.mxu0 %v154
    %v185 = vpop.f32.mrf.mxu0
    %v186 = vadd.f32 %v152, %v185
    %187 = vdwg.mxu0
    %s188 = scalar_lea.vmem %s0, 16
    %v189 = vld [vmem:[%s188] sm:$0xff]
    %v190 = vld [vmem:[%s188 + $0x8] sm:$0xff]
    %v191 = vsel %vm43, %v189, 0.0
    %v192 = vsel %vm43, %v190, 0.0
    %v193 = vadd.f32 %v191, %v192
    %v194 = vrot.slane %v193, 4
    %v195 = vadd.f32 %v193, %v194
    %v196 = vrot.slane %v195, 2
    %v197 = vadd.f32 %v195, %v196
    %v198 = vrot.slane %v197, 1
    %v199 = vadd.f32 %v197, %v198
    %v200 = vmul.f32 %v199, %v59
    %v201 = vsub.f32 %v189, %v200
    %v202 = vsub.f32 %v190, %v200
    %v203 = vmul.f32 %v201, %v201
    %v204 = vmul.f32 %v202, %v202
    %v205 = vsel %vm43, %v203, 0.0
    %v206 = vsel %vm43, %v204, 0.0
    %v207 = vadd.f32 %v205, %v206
    %v208 = vrot.slane %v207, 4
    %v209 = vadd.f32 %v207, %v208
    %v210 = vrot.slane %v209, 2
    %v211 = vadd.f32 %v209, %v210
    %v212 = vrot.slane %v211, 1
    %v213 = vadd.f32 %v211, %v212
    %v214 = vmul.f32 %v213, %v59
    %v215 = vadd.f32 %v214, 1e-05
    %v216 = vrsqrt.pop %v215
    %v217 = vmul.f32 %v216, %v215
    %v218 = vmul.f32 %v217, %v216
    %v219 = vmul.f32 0.5, %v218
    %v220 = vsub.f32 1.5, %v219
    %v221 = vmul.f32 %v216, %v220
    %v222 = vmul.f32 %v215, %v221
    %vm223 = vcmp.eq.f32.partialorder %v215, inf
    %v224 = vsel %vm223, %v215, %v222
    %vm225 = vcmp.eq.f32.partialorder %v215, 0.0
    %v226 = vand.u32 %v215, 2147483648
    %v227 = vsel %vm225, %v226, %v224
    %v228 = vrcp.pop %v227
    %v229 = vmul.f32 %v227, %v228
    %v230 = vsub.f32 1.0, %v229
    %v231 = vmul.f32 %v228, %v230
    %v232 = vadd.f32 %v228, %v231
    %vm233 = vweird.f32 %v227
    %vm234 = vweird.f32 %v228
    %vm235 = vmor %vm233, %vm234
    %v236 = vsel %vm235, %v228, %v232
    %v237 = vand.u32 2147483647, %v227
    %vm238 = vcmp.eq.f32.partialorder %v237, 8.507059e+37
    %v239 = vand.u32 %v227, 2147483648
    %v240 = vor.u32 1.1754944e-38, %v239
    %v241 = vsel %vm238, %v240, %v236
    %v242 = vmul.f32 %v201, %v241
    %v243 = vmul.f32 %v202, %v241
    %v244 = vmul.f32 %v242, %v104
    %v245 = vmul.f32 %v243, %v104
    %v246 = vadd.f32 %v244, %v107
    %v247 = vadd.f32 %v245, %v107
    %248 = vmatpush.msra.mxu0 0.0
    %249 = vmatpush.msra.mxu0 0.0
    %250 = vmatpush.msra.mxu0 0.0
    %251 = vmatpush.msra.mxu0 0.0
    %252 = vmatpush.msra.mxu0 0.0
    %253 = vmatpush.msra.mxu0 0.0
    %254 = vmatpush.msra.mxu0 0.0
    %255 = vmatpush.msra.mxu0 0.0
    %256 = vmatpush.msra.mxu0 0.0
    %257 = vmatpush.msra.mxu0 0.0
    %258 = vmatpush.msra.mxu0 0.0
    %259 = vmatpush.msra.mxu0 0.0
    %260 = vmatpush.msra.mxu0 0.0
    %261 = vmatpush.msra.mxu0 0.0
    %262 = vmatpush.msra.mxu0 %v247
    %263 = vmatpush.msra.mxu0 %v246
    %264 = vmatmul.f32.gmra.mxu0 %v112
    %v265 = vpop.f32.mrf.mxu0
    %v266 = vadd.f32 0.0, %v265
    %267 = vmatmul.f32.gmra.mxu0 %v115
    %v268 = vpop.f32.mrf.mxu0
    %v269 = vadd.f32 0.0, %v268
    %270 = vmatmul.f32.gmra.mxu0 %v118
    %v271 = vpop.f32.mrf.mxu0
    %v272 = vadd.f32 0.0, %v271
    %273 = vmatmul.f32.gmra.mxu0 %v121
    %v274 = vpop.f32.mrf.mxu0
    %v275 = vadd.f32 0.0, %v274
    %276 = vdwg.mxu0
    %v278 = vsel %vm43, %v266, 0
    %v281 = vsel %vm43, %v269, 0
    %v284 = vsel %vm43, %v272, 0
    %v287 = vsel %vm43, %v275, 0
    %289 = vmatpush.xpose.msra.mxu0 0.0
    %290 = vmatpush.xpose.msra.mxu0 0.0
    %291 = vmatpush.xpose.msra.mxu0 0.0
    %292 = vmatpush.xpose.msra.mxu0 0.0
    %293 = vmatpush.xpose.msra.mxu0 0.0
    %294 = vmatpush.xpose.msra.mxu0 0.0
    %295 = vmatpush.xpose.msra.mxu0 0.0
    %296 = vmatpush.xpose.msra.mxu0 0.0
    %297 = vmatpush.xpose.msra.mxu0 0.0
    %298 = vmatpush.xpose.msra.mxu0 0.0
    %299 = vmatpush.xpose.msra.mxu0 0.0
    %300 = vmatpush.xpose.msra.mxu0 0.0
    %301 = vmatpush.xpose.msra.mxu0 %v287
    %302 = vmatpush.xpose.msra.mxu0 %v284
    %303 = vmatpush.xpose.msra.mxu0 %v281
    %304 = vmatpush.xpose.msra.mxu0 %v278
    %305 = vmatmul.f32.gmra.mxu0 %v154
    %v306 = vpop.f32.mrf.mxu0
    %v307 = vadd.f32 %v152, %v306
    %308 = vdwg.mxu0
    %v310 = vrot.slane %v307, 4
    %vm312 = vcmask 1043456
    %v313 = vsel %vm312, %v186, %v310
    %vm314 = vcmp.ge.s32.totalorder %v35, 1
    %vm315 = vcmp.lt.s32.totalorder %v35, 4
    %vm316 = vmand %vm314, %vm315
    %vm317 = vcmp.ge.s32.totalorder %v35, 5
    %vm318 = vcmp.lt.s32.totalorder %v35, 8
    %vm319 = vmand %vm317, %vm318
    %vm320 = vmor %vm316, %vm319
    %vm321 = vcmp.ge.s32.totalorder %v35, 2
    %vm322 = vmand %vm321, %vm315
    %vm323 = vcmp.ge.s32.totalorder %v35, 6
    %vm324 = vmand %vm323, %vm318
    %vm325 = vmor %vm322, %vm324
    %vm326 = vcmp.ge.s32.totalorder %v35, 3
    %vm327 = vmand %vm326, %vm315
    %vm328 = vcmp.ge.s32.totalorder %v35, 7
    %vm329 = vmand %vm328, %vm318
    %vm330 = vmor %vm327, %vm329
    %v331 = vld [vmem:[#allocation2 + $0x58] sm:$0x1]
    %v332 = vld [vmem:[#allocation2 + $0x60] sm:$0x1]
    %vm333 = vcmask 261120
    %v334 = vsel %vm333, %v313, 0.0
    %335 = vadd.xlane.f32.xlu0 %v334
    %v336 = vpop.xlane.xlu0 %335
    %v337 = vrcp.pop 32.0
    %v338 = vmul.f32 32.0, %v337
    %v339 = vsub.f32 1.0, %v338
    %v340 = vmul.f32 %v337, %v339
    %v341 = vadd.f32 %v337, %v340
    %vm342 = vweird.f32 %v337
    %v343 = vsel %vm342, %v337, %v341
    %v344 = vmul.f32 %v336, %v343
    %v345 = vsub.f32 %v313, %v344
    %v346 = vmul.f32 %v345, %v345
    %v347 = vsel %vm333, %v346, 0.0
    %348 = vadd.xlane.f32.xlu0 %v347
    %v349 = vpop.xlane.xlu0 %348
    %v350 = vmul.f32 %v349, %v343
    %v351 = vadd.f32 %v350, 1e-05
    %v352 = vrsqrt.pop %v351
    %v353 = vmul.f32 %v352, %v351
    %v354 = vmul.f32 %v353, %v352
    %v355 = vmul.f32 0.5, %v354
    %v356 = vsub.f32 1.5, %v355
    %v357 = vmul.f32 %v352, %v356
    %vm358 = vweird.f32 %v351
    %vm359 = vweird.f32 %v352
    %vm360 = vmor %vm358, %vm359
    %v361 = vsel %vm360, %v352, %v357
    %v362 = vmul.f32 %v345, %v361
    %v363 = vperm.slane %v331, 0
    %v364 = vmul.f32 %v362, %v363
    %v365 = vperm.slane %v332, 0
    %v366 = vadd.f32 %v364, %v365
    %v367 = vld [vmem:[#allocation2 + $0x68] sm:$0xff]
    %v368 = vld [vmem:[#allocation2 + $0x70] sm:$0xff]
    %v369 = vld [vmem:[#allocation2 + $0x78] sm:$0xff]
    %v370 = vld [vmem:[#allocation2 + $0x80] sm:$0xff]
    %v372 = vsel %vm333, %v366, 0
    %374 = vmatpush.msra.mxu0 0.0
    %375 = vmatpush.msra.mxu0 0.0
    %376 = vmatpush.msra.mxu0 0.0
    %377 = vmatpush.msra.mxu0 0.0
    %378 = vmatpush.msra.mxu0 0.0
    %379 = vmatpush.msra.mxu0 0.0
    %380 = vmatpush.msra.mxu0 0.0
    %381 = vmatpush.msra.mxu0 0.0
    %382 = vmatpush.msra.mxu0 0.0
    %383 = vmatpush.msra.mxu0 0.0
    %384 = vmatpush.msra.mxu0 0.0
    %385 = vmatpush.msra.mxu0 0.0
    %386 = vmatpush.msra.mxu0 %v370
    %387 = vmatpush.msra.mxu0 %v369
    %388 = vmatpush.msra.mxu0 %v368
    %389 = vmatpush.msra.mxu0 %v367
    %390 = vmatmul.f32.gmra.mxu0 %v372
    %v391 = vpop.f32.mrf.mxu0
    %v392 = vadd.f32 0.0, %v391
    %393 = vdwg.mxu0
    %v394 = vld [vmem:[#allocation2 + $0x88] sm:$0xff]
    %v395 = vld [vmem:[#allocation2 + $0x90] sm:$0xff]
    %v396 = vld [vmem:[#allocation2 + $0x98] sm:$0xff]
    %v397 = vld [vmem:[#allocation2 + $0xa0] sm:$0xff]
    %398 = vmatpush.msra.mxu0 0.0
    %399 = vmatpush.msra.mxu0 0.0
    %400 = vmatpush.msra.mxu0 0.0
    %401 = vmatpush.msra.mxu0 0.0
    %402 = vmatpush.msra.mxu0 0.0
    %403 = vmatpush.msra.mxu0 0.0
    %404 = vmatpush.msra.mxu0 0.0
    %405 = vmatpush.msra.mxu0 0.0
    %406 = vmatpush.msra.mxu0 0.0
    %407 = vmatpush.msra.mxu0 0.0
    %408 = vmatpush.msra.mxu0 0.0
    %409 = vmatpush.msra.mxu0 0.0
    %410 = vmatpush.msra.mxu0 %v397
    %411 = vmatpush.msra.mxu0 %v396
    %412 = vmatpush.msra.mxu0 %v395
    %413 = vmatpush.msra.mxu0 %v394
    %414 = vmatmul.f32.gmra.mxu0 %v372
    %v415 = vpop.f32.mrf.mxu0
    %v416 = vadd.f32 0.0, %v415
    %417 = vdwg.mxu0
    %v418 = vld [vmem:[#allocation2 + $0xa8] sm:$0xf]
    %v419 = vperm.slane %v418, 3
    %v420 = vmul.f32 %v392, %v419
    %v422 = vrot.slane %v392, 5
    %vm424 = vcmask 1042432
    %v425 = vsel %vm424, 0.0, %v422
    %v426 = vsel %vm320, 1, 0
    %vm427 = vcmp.eq.s32.totalorder %v426, 1
    %vm429 = vcmask 1045504
    %v430 = vrot.slane %v425, 2
    %v431 = vrot.slane %v422, 2
    %v432 = vsel %vm429, %v430, %v431
    %v434 = vsel %vm427, %v432, 0.0
    %v435 = vperm.slane %v418, 2
    %v436 = vmul.f32 %v434, %v435
    %v437 = vadd.f32 %v420, %v436
    %v438 = vsel %vm325, 1, 0
    %vm439 = vcmp.eq.s32.totalorder %v438, 1
    %vm440 = vcmask 1046528
    %v441 = vrot.slane %v425, 1
    %v442 = vrot.slane %v422, 1
    %v443 = vsel %vm440, %v441, %v442
    %v445 = vsel %vm439, %v443, 0.0
    %v446 = vperm.slane %v418, 1
    %v447 = vmul.f32 %v445, %v446
    %v448 = vadd.f32 %v437, %v447
    %v449 = vsel %vm330, 1, 0
    %vm450 = vcmp.eq.s32.totalorder %v449, 1
    %v451 = vsel %vm450, %v425, 0.0
    %v452 = vperm.slane %v418, 0
    %v453 = vmul.f32 %v451, %v452
    %v454 = vadd.f32 %v448, %v453
    %v455 = vld [vmem:[#allocation2 + $0xb0] sm:$0x1]
    %v456 = vperm.slane %v455, 0
    %v457 = vadd.f32 %v454, %v456
    %v458 = vxor.u32 %v457, 2147483648
    %v459 = vmul.f32 %v458, 1.442695
    %v460 = vpow.pop %v459
    %v461 = vadd.f32 %v460, 1.0
    %v462 = vrcp.pop %v461
    %v463 = vmul.f32 %v461, %v462
    %v464 = vsub.f32 1.0, %v463
    %v465 = vmul.f32 %v462, %v464
    %v466 = vadd.f32 %v462, %v465
    %vm467 = vweird.f32 %v461
    %vm468 = vweird.f32 %v462
    %vm469 = vmor %vm467, %vm468
    %v470 = vsel %vm469, %v462, %v466
    %v471 = vand.u32 2147483647, %v461
    %vm472 = vcmp.eq.f32.partialorder %v471, 8.507059e+37
    %v473 = vand.u32 %v461, 2147483648
    %v474 = vor.u32 1.1754944e-38, %v473
    %v475 = vsel %vm472, %v474, %v470
    %v476 = vmul.f32 1.0, %v475
    %v477 = vmul.f32 %v457, %v476
    %v478 = vld [vmem:[#allocation2 + $0xb8] sm:$0xff]
    %v479 = vld [vmem:[#allocation2 + $0xc0] sm:$0xff]
    %vm480 = vcmask 523264
    %v482 = vsel %vm480, %v478, 0
    %v485 = vsel %vm480, %v479, 0
    %v488 = vsel %vm480, %v477, 0
    %490 = vmatpush.xpose.msra.mxu0 0.0
    %491 = vmatpush.xpose.msra.mxu0 0.0
    %492 = vmatpush.xpose.msra.mxu0 0.0
    %493 = vmatpush.xpose.msra.mxu0 0.0
    %494 = vmatpush.xpose.msra.mxu0 0.0
    %495 = vmatpush.xpose.msra.mxu0 0.0
    %496 = vmatpush.xpose.msra.mxu0 0.0
    %497 = vmatpush.xpose.msra.mxu0 0.0
    %498 = vmatpush.xpose.msra.mxu0 0.0
    %499 = vmatpush.xpose.msra.mxu0 0.0
    %500 = vmatpush.xpose.msra.mxu0 0.0
    %501 = vmatpush.xpose.msra.mxu0 0.0
    %502 = vmatpush.xpose.msra.mxu0 0.0
    %503 = vmatpush.xpose.msra.mxu0 0.0
    %504 = vmatpush.xpose.msra.mxu0 0.0
    %505 = vmatpush.xpose.msra.mxu0 %v488
    %506 = vmatmul.f32.gmra.mxu0 %v482
    %v507 = vpop.f32.mrf.mxu0
    %v508 = vadd.f32 0.0, %v507
    %509 = vmatmul.f32.gmra.mxu0 %v485
    %v510 = vpop.f32.mrf.mxu0
    %v511 = vadd.f32 0.0, %v510
    %512 = vdwg.mxu0
    %v513 = vld [vmem:[#allocation2 + $0xc8] sm:$0xff]
    %v514 = vld [vmem:[#allocation2 + $0xd0] sm:$0xff]
    %v516 = vsel %vm480, %v513, 0
    %v519 = vsel %vm480, %v514, 0
    %521 = vmatpush.xpose.msra.mxu0 0.0
    %522 = vmatpush.xpose.msra.mxu0 0.0
    %523 = vmatpush.xpose.msra.mxu0 0.0
    %524 = vmatpush.xpose.msra.mxu0 0.0
    %525 = vmatpush.xpose.msra.mxu0 0.0
    %526 = vmatpush.xpose.msra.mxu0 0.0
    %527 = vmatpush.xpose.msra.mxu0 0.0
    %528 = vmatpush.xpose.msra.mxu0 0.0
    %529 = vmatpush.xpose.msra.mxu0 0.0
    %530 = vmatpush.xpose.msra.mxu0 0.0
    %531 = vmatpush.xpose.msra.mxu0 0.0
    %532 = vmatpush.xpose.msra.mxu0 0.0
    %533 = vmatpush.xpose.msra.mxu0 0.0
    %534 = vmatpush.xpose.msra.mxu0 0.0
    %535 = vmatpush.xpose.msra.mxu0 0.0
    %536 = vmatpush.xpose.msra.mxu0 %v488
    %537 = vmatmul.f32.gmra.mxu0 %v516
    %v538 = vpop.f32.mrf.mxu0
    %v539 = vadd.f32 0.0, %v538
    %540 = vmatmul.f32.gmra.mxu0 %v519
    %v541 = vpop.f32.mrf.mxu0
    %v542 = vadd.f32 0.0, %v541
    %543 = vdwg.mxu0
    %v544 = vld [vmem:[#allocation2 + $0xd8] sm:$0xff]
    %v545 = vld [vmem:[#allocation2 + $0xe0] sm:$0xff]
    %v546 = vld [vmem:[#allocation2 + $0xe8] sm:$0xff]
    %v547 = vld [vmem:[#allocation2 + $0xf0] sm:$0xff]
    %v548 = vld [vmem:[#allocation2 + $0xf8] sm:$0xff]
    %v549 = vld [vmem:[#allocation2 + $0x100] sm:$0xff]
    %v550 = vld [vmem:[#allocation2 + $0x108] sm:$0xff]
    %v551 = vld [vmem:[#allocation2 + $0x110] sm:$0xff]
    %v552 = vld [vmem:[#allocation2 + $0x118] sm:$0x1]
    %v553 = vperm.slane %v552, 0
    %554 = vmatpush.msra.mxu0 0.0
    %555 = vmatpush.msra.mxu0 0.0
    %556 = vmatpush.msra.mxu0 0.0
    %557 = vmatpush.msra.mxu0 0.0
    %558 = vmatpush.msra.mxu0 0.0
    %559 = vmatpush.msra.mxu0 0.0
    %560 = vmatpush.msra.mxu0 0.0
    %561 = vmatpush.msra.mxu0 0.0
    %562 = vmatpush.msra.mxu0 %v551
    %563 = vmatpush.msra.mxu0 %v550
    %564 = vmatpush.msra.mxu0 %v549
    %565 = vmatpush.msra.mxu0 %v548
    %566 = vmatpush.msra.mxu0 %v547
    %567 = vmatpush.msra.mxu0 %v546
    %568 = vmatpush.msra.mxu0 %v545
    %569 = vmatpush.msra.mxu0 %v544
    %570 = vmatmul.f32.gmra.mxu0 %v488
    %v571 = vpop.f32.mrf.mxu0
    %v572 = vadd.f32 %v553, %v571
    %573 = vdwg.mxu0
    %v574 = vmax.f32 %v572, 0.0
    %v575 = vand.u32 2147483647, %v572
    %v576 = vsub.f32 0.0, %v575
    %v577 = vmul.f32 %v576, 1.442695
    %v578 = vpow.pop %v577
    %v579 = vadd.f32 %v578, 1.0
    %v580 = vlog2.pop %v579
    %v581 = vmul.f32 %v580, 0.6931472
    %v582 = vadd.f32 %v574, %v581
    %v583 = vld [vmem:[#allocation2 + $0x120] sm:$0xff]
    %v584 = vld [vmem:[#allocation2 + $0x128] sm:$0xff]
    %v585 = vxor.u32 %v416, 2147483648
    %v586 = vmul.f32 %v585, 1.442695
    %v587 = vpow.pop %v586
    %v588 = vadd.f32 %v587, 1.0
    %v589 = vrcp.pop %v588
    %v590 = vmul.f32 %v588, %v589
    %v591 = vsub.f32 1.0, %v590
    %v592 = vmul.f32 %v589, %v591
    %v593 = vadd.f32 %v589, %v592
    %vm594 = vweird.f32 %v588
    %vm595 = vweird.f32 %v589
    %vm596 = vmor %vm594, %vm595
    %v597 = vsel %vm596, %v589, %v593
    %v598 = vand.u32 2147483647, %v588
    %vm599 = vcmp.eq.f32.partialorder %v598, 8.507059e+37
    %v600 = vand.u32 %v588, 2147483648
    %v601 = vor.u32 1.1754944e-38, %v600
    %v602 = vsel %vm599, %v601, %v597
    %v603 = vmul.f32 1.0, %v602
    %v604 = vmul.f32 %v416, %v603
    %v605 = vmul.f32 %v582, %v477
    %v606 = vld [vmem:[#allocation2 + $0x130] sm:$0x1]
    %v607 = vperm.slane %v606, 0
    %v608 = vmul.f32 %v477, %v607
    %610 = vset.pattern.permute.xlu0 0
    %611 = vperm.xlu0 %610, %v508
    %v612 = vpop.permute.xlu0 %611
    %615 = vset.pattern.permute.xlu0 0
    %616 = vperm.xlu0 %615, %v511
    %v617 = vpop.permute.xlu0 %616
    %v619 = vperm.slane %v605, 0
    %v620 = vmul.f32 %v612, %v619
    %v621 = vmul.f32 %v617, %v619
    %622 = vset.pattern.permute.xlu0 1
    %623 = vperm.xlu0 %622, %v508
    %v624 = vpop.permute.xlu0 %623
    %626 = vset.pattern.permute.xlu0 1
    %627 = vperm.xlu0 %626, %v511
    %v628 = vpop.permute.xlu0 %627
    %v630 = vperm.slane %v605, 1
    %v631 = vmul.f32 %v624, %v630
    %v632 = vmul.f32 %v628, %v630
    %633 = vset.pattern.permute.xlu0 2
    %634 = vperm.xlu0 %633, %v508
    %v635 = vpop.permute.xlu0 %634
    %637 = vset.pattern.permute.xlu0 2
    %638 = vperm.xlu0 %637, %v511
    %v639 = vpop.permute.xlu0 %638
    %v641 = vperm.slane %v605, 2
    %v642 = vmul.f32 %v635, %v641
    %v643 = vmul.f32 %v639, %v641
    %644 = vset.pattern.permute.xlu0 3
    %645 = vperm.xlu0 %644, %v508
    %v646 = vpop.permute.xlu0 %645
    %648 = vset.pattern.permute.xlu0 3
    %649 = vperm.xlu0 %648, %v511
    %v650 = vpop.permute.xlu0 %649
    %v652 = vperm.slane %v605, 3
    %v653 = vmul.f32 %v646, %v652
    %v654 = vmul.f32 %v650, %v652
    %v655 = vperm.slane %v582, 1
    %v656 = vmul.f32 %v583, %v655
    %v657 = vmul.f32 %v584, %v655
    %v658 = vmul.f32 %v656, 1.442695
    %v659 = vpow.pop %v658
    %v660 = vmul.f32 %v657, 1.442695
    %v661 = vpow.pop %v660
    %v662 = vperm.slane %v582, 2
    %v663 = vmul.f32 %v583, %v662
    %v664 = vmul.f32 %v584, %v662
    %v665 = vmul.f32 %v663, 1.442695
    %v666 = vpow.pop %v665
    %v667 = vmul.f32 %v664, 1.442695
    %v668 = vpow.pop %v667
    %v669 = vperm.slane %v582, 3
    %v670 = vmul.f32 %v583, %v669
    %v671 = vmul.f32 %v584, %v669
    %v672 = vmul.f32 %v670, 1.442695
    %v673 = vpow.pop %v672
    %v674 = vmul.f32 %v671, 1.442695
    %v675 = vpow.pop %v674
    %v676 = vmul.f32 %v659, %v620
    %v677 = vmul.f32 %v661, %v621
    %v678 = vadd.f32 %v676, %v631
    %v679 = vadd.f32 %v677, %v632
    %v680 = vmul.f32 %v666, %v678
    %v681 = vmul.f32 %v668, %v679
    %v682 = vadd.f32 %v680, %v642
    %v683 = vadd.f32 %v681, %v643
    %v684 = vmul.f32 %v673, %v682
    %v685 = vmul.f32 %v675, %v683
    %v686 = vadd.f32 %v684, %v653
    %v687 = vadd.f32 %v685, %v654
    %689 = vset.pattern.permute.xlu0 0
    %690 = vperm.xlu0 %689, %v539
    %v691 = vpop.permute.xlu0 %690
    %694 = vset.pattern.permute.xlu0 0
    %695 = vperm.xlu0 %694, %v542
    %v696 = vpop.permute.xlu0 %695
    %v698 = vmul.f32 %v691, %v620
    %v699 = vmul.f32 %v696, %v621
    %v700 = vsel %vm480, %v698, 0.0
    %v701 = vsel %vm480, %v699, 0.0
    %v702 = vadd.f32 %v700, %v701
    %v703 = vrot.slane %v702, 4
    %v704 = vadd.f32 %v702, %v703
    %v705 = vrot.slane %v704, 2
    %v706 = vadd.f32 %v704, %v705
    %v707 = vrot.slane %v706, 1
    %v708 = vadd.f32 %v706, %v707
    %709 = vset.pattern.permute.xlu0 1
    %710 = vperm.xlu0 %709, %v539
    %v711 = vpop.permute.xlu0 %710
    %713 = vset.pattern.permute.xlu0 1
    %714 = vperm.xlu0 %713, %v542
    %v715 = vpop.permute.xlu0 %714
    %v717 = vmul.f32 %v711, %v678
    %v718 = vmul.f32 %v715, %v679
    %v719 = vsel %vm480, %v717, 0.0
    %v720 = vsel %vm480, %v718, 0.0
    %v721 = vadd.f32 %v719, %v720
    %v722 = vrot.slane %v721, 4
    %v723 = vadd.f32 %v721, %v722
    %v724 = vrot.slane %v723, 2
    %v725 = vadd.f32 %v723, %v724
    %v726 = vrot.slane %v725, 1
    %v727 = vadd.f32 %v725, %v726
    %728 = vset.pattern.permute.xlu0 2
    %729 = vperm.xlu0 %728, %v539
    %v730 = vpop.permute.xlu0 %729
    %732 = vset.pattern.permute.xlu0 2
    %733 = vperm.xlu0 %732, %v542
    %v734 = vpop.permute.xlu0 %733
    %v736 = vmul.f32 %v730, %v682
    %v737 = vmul.f32 %v734, %v683
    %v738 = vsel %vm480, %v736, 0.0
    %v739 = vsel %vm480, %v737, 0.0
    %v740 = vadd.f32 %v738, %v739
    %v741 = vrot.slane %v740, 4
    %v742 = vadd.f32 %v740, %v741
    %v743 = vrot.slane %v742, 2
    %v744 = vadd.f32 %v742, %v743
    %v745 = vrot.slane %v744, 1
    %v746 = vadd.f32 %v744, %v745
    %747 = vset.pattern.permute.xlu0 3
    %748 = vperm.xlu0 %747, %v539
    %v749 = vpop.permute.xlu0 %748
    %751 = vset.pattern.permute.xlu0 3
    %752 = vperm.xlu0 %751, %v542
    %v753 = vpop.permute.xlu0 %752
    %v755 = vmul.f32 %v749, %v686
    %v756 = vmul.f32 %v753, %v687
    %v757 = vsel %vm480, %v755, 0.0
    %v758 = vsel %vm480, %v756, 0.0
    %v759 = vadd.f32 %v757, %v758
    %v760 = vrot.slane %v759, 4
    %v761 = vadd.f32 %v759, %v760
    %v762 = vrot.slane %v761, 2
    %v763 = vadd.f32 %v761, %v762
    %v764 = vrot.slane %v763, 1
    %v765 = vadd.f32 %v763, %v764
    %766 = vset.pattern.permute.xlu0 4
    %767 = vperm.xlu0 %766, %v508
    %v768 = vpop.permute.xlu0 %767
    %770 = vset.pattern.permute.xlu0 4
    %771 = vperm.xlu0 %770, %v511
    %v772 = vpop.permute.xlu0 %771
    %v774 = vperm.slane %v605, 4
    %v775 = vmul.f32 %v768, %v774
    %v776 = vmul.f32 %v772, %v774
    %777 = vset.pattern.permute.xlu0 5
    %778 = vperm.xlu0 %777, %v508
    %v779 = vpop.permute.xlu0 %778
    %781 = vset.pattern.permute.xlu0 5
    %782 = vperm.xlu0 %781, %v511
    %v783 = vpop.permute.xlu0 %782
    %v785 = vperm.slane %v605, 5
    %v786 = vmul.f32 %v779, %v785
    %v787 = vmul.f32 %v783, %v785
    %788 = vset.pattern.permute.xlu0 6
    %789 = vperm.xlu0 %788, %v508
    %v790 = vpop.permute.xlu0 %789
    %792 = vset.pattern.permute.xlu0 6
    %793 = vperm.xlu0 %792, %v511
    %v794 = vpop.permute.xlu0 %793
    %v796 = vperm.slane %v605, 6
    %v797 = vmul.f32 %v790, %v796
    %v798 = vmul.f32 %v794, %v796
    %799 = vset.pattern.permute.xlu0 7
    %800 = vperm.xlu0 %799, %v508
    %v801 = vpop.permute.xlu0 %800
    %803 = vset.pattern.permute.xlu0 7
    %804 = vperm.xlu0 %803, %v511
    %v805 = vpop.permute.xlu0 %804
    %v807 = vperm.slane %v605, 7
    %v808 = vmul.f32 %v801, %v807
    %v809 = vmul.f32 %v805, %v807
    %v810 = vperm.slane %v582, 5
    %v811 = vmul.f32 %v583, %v810
    %v812 = vmul.f32 %v584, %v810
    %v813 = vmul.f32 %v811, 1.442695
    %v814 = vpow.pop %v813
    %v815 = vmul.f32 %v812, 1.442695
    %v816 = vpow.pop %v815
    %v817 = vperm.slane %v582, 6
    %v818 = vmul.f32 %v583, %v817
    %v819 = vmul.f32 %v584, %v817
    %v820 = vmul.f32 %v818, 1.442695
    %v821 = vpow.pop %v820
    %v822 = vmul.f32 %v819, 1.442695
    %v823 = vpow.pop %v822
    %v824 = vperm.slane %v582, 7
    %v825 = vmul.f32 %v583, %v824
    %v826 = vmul.f32 %v584, %v824
    %v827 = vmul.f32 %v825, 1.442695
    %v828 = vpow.pop %v827
    %v829 = vmul.f32 %v826, 1.442695
    %v830 = vpow.pop %v829
    %v831 = vmul.f32 %v814, %v775
    %v832 = vmul.f32 %v816, %v776
    %v833 = vadd.f32 %v831, %v786
    %v834 = vadd.f32 %v832, %v787
    %v835 = vmul.f32 %v821, %v833
    %v836 = vmul.f32 %v823, %v834
    %v837 = vadd.f32 %v835, %v797
    %v838 = vadd.f32 %v836, %v798
    %v839 = vmul.f32 %v828, %v837
    %v840 = vmul.f32 %v830, %v838
    %v841 = vadd.f32 %v839, %v808
    %v842 = vadd.f32 %v840, %v809
    %843 = vset.pattern.permute.xlu0 4
    %844 = vperm.xlu0 %843, %v539
    %v845 = vpop.permute.xlu0 %844
    %847 = vset.pattern.permute.xlu0 4
    %848 = vperm.xlu0 %847, %v542
    %v849 = vpop.permute.xlu0 %848
    %v851 = vmul.f32 %v845, %v775
    %v852 = vmul.f32 %v849, %v776
    %v853 = vsel %vm480, %v851, 0.0
    %v854 = vsel %vm480, %v852, 0.0
    %v855 = vadd.f32 %v853, %v854
    %v856 = vrot.slane %v855, 4
    %v857 = vadd.f32 %v855, %v856
    %v858 = vrot.slane %v857, 2
    %v859 = vadd.f32 %v857, %v858
    %v860 = vrot.slane %v859, 1
    %v861 = vadd.f32 %v859, %v860
    %862 = vset.pattern.permute.xlu0 5
    %863 = vperm.xlu0 %862, %v539
    %v864 = vpop.permute.xlu0 %863
    %866 = vset.pattern.permute.xlu0 5
    %867 = vperm.xlu0 %866, %v542
    %v868 = vpop.permute.xlu0 %867
    %v870 = vmul.f32 %v864, %v833
    %v871 = vmul.f32 %v868, %v834
    %v872 = vsel %vm480, %v870, 0.0
    %v873 = vsel %vm480, %v871, 0.0
    %v874 = vadd.f32 %v872, %v873
    %v875 = vrot.slane %v874, 4
    %v876 = vadd.f32 %v874, %v875
    %v877 = vrot.slane %v876, 2
    %v878 = vadd.f32 %v876, %v877
    %v879 = vrot.slane %v878, 1
    %v880 = vadd.f32 %v878, %v879
    %881 = vset.pattern.permute.xlu0 6
    %882 = vperm.xlu0 %881, %v539
    %v883 = vpop.permute.xlu0 %882
    %885 = vset.pattern.permute.xlu0 6
    %886 = vperm.xlu0 %885, %v542
    %v887 = vpop.permute.xlu0 %886
    %v889 = vmul.f32 %v883, %v837
    %v890 = vmul.f32 %v887, %v838
    %v891 = vsel %vm480, %v889, 0.0
    %v892 = vsel %vm480, %v890, 0.0
    %v893 = vadd.f32 %v891, %v892
    %v894 = vrot.slane %v893, 4
    %v895 = vadd.f32 %v893, %v894
    %v896 = vrot.slane %v895, 2
    %v897 = vadd.f32 %v895, %v896
    %v898 = vrot.slane %v897, 1
    %v899 = vadd.f32 %v897, %v898
    %900 = vset.pattern.permute.xlu0 7
    %901 = vperm.xlu0 %900, %v539
    %v902 = vpop.permute.xlu0 %901
    %904 = vset.pattern.permute.xlu0 7
    %905 = vperm.xlu0 %904, %v542
    %v906 = vpop.permute.xlu0 %905
    %v908 = vmul.f32 %v902, %v841
    %v909 = vmul.f32 %v906, %v842
    %v910 = vsel %vm480, %v908, 0.0
    %v911 = vsel %vm480, %v909, 0.0
    %v912 = vadd.f32 %v910, %v911
    %v913 = vrot.slane %v912, 4
    %v914 = vadd.f32 %v912, %v913
    %v915 = vrot.slane %v914, 2
    %v916 = vadd.f32 %v914, %v915
    %v917 = vrot.slane %v916, 1
    %v918 = vadd.f32 %v916, %v917
    %vm919 = vcmask 1040384
    %v920 = vsel %vm919, %v708, %v727
    %vm921 = vcmask 1041408
    %v922 = vsel %vm921, %v920, %v746
    %v923 = vsel %vm424, %v922, %v765
    %v924 = vsel %vm312, %v923, %v861
    %vm925 = vcmask 1044480
    %v926 = vsel %vm925, %v924, %v880
    %v927 = vsel %vm429, %v926, %v899
    %v928 = vsel %vm440, %v927, %v918
    %v929 = vadd.f32 %v928, %v608
    %v930 = vmul.f32 %v929, %v604
    %v931 = vld [vmem:[#allocation2 + $0x138] sm:$0xff]
    %v932 = vld [vmem:[#allocation2 + $0x140] sm:$0xff]
    %v933 = vld [vmem:[#allocation2 + $0x148] sm:$0xff]
    %v934 = vld [vmem:[#allocation2 + $0x150] sm:$0xff]
    %v935 = vld [vmem:[#allocation2 + $0x158] sm:$0xff]
    %v936 = vld [vmem:[#allocation2 + $0x160] sm:$0xff]
    %v937 = vld [vmem:[#allocation2 + $0x168] sm:$0xff]
    %v938 = vld [vmem:[#allocation2 + $0x170] sm:$0xff]
    %v940 = vsel %vm480, %v930, 0
    %942 = vmatpush.msra.mxu0 0.0
    %943 = vmatpush.msra.mxu0 0.0
    %944 = vmatpush.msra.mxu0 0.0
    %945 = vmatpush.msra.mxu0 0.0
    %946 = vmatpush.msra.mxu0 0.0
    %947 = vmatpush.msra.mxu0 0.0
    %948 = vmatpush.msra.mxu0 0.0
    %949 = vmatpush.msra.mxu0 0.0
    %950 = vmatpush.msra.mxu0 %v938
    %951 = vmatpush.msra.mxu0 %v937
    %952 = vmatpush.msra.mxu0 %v936
    %953 = vmatpush.msra.mxu0 %v935
    %954 = vmatpush.msra.mxu0 %v934
    %955 = vmatpush.msra.mxu0 %v933
    %956 = vmatpush.msra.mxu0 %v932
    %957 = vmatpush.msra.mxu0 %v931
    %958 = vmatmul.f32.gmra.mxu0 %v940
    %v959 = vpop.f32.mrf.mxu0
    %v960 = vadd.f32 0.0, %v959
    %961 = vdwg.mxu0
    %v962 = vadd.f32 %v313, %v960
    %v963 = vld [vmem:[#allocation2 + $0x178] sm:$0x1]
    %v964 = vld [vmem:[#allocation2 + $0x180] sm:$0x1]
    %v965 = vsel %vm333, %v962, 0.0
    %966 = vadd.xlane.f32.xlu0 %v965
    %v967 = vpop.xlane.xlu0 %966
    %v968 = vmul.f32 %v967, %v343
    %v969 = vsub.f32 %v962, %v968
    %v970 = vmul.f32 %v969, %v969
    %v971 = vsel %vm333, %v970, 0.0
    %972 = vadd.xlane.f32.xlu0 %v971
    %v973 = vpop.xlane.xlu0 %972
    %v974 = vmul.f32 %v973, %v343
    %v975 = vadd.f32 %v974, 1e-05
    %v976 = vrsqrt.pop %v975
    %v977 = vmul.f32 %v976, %v975
    %v978 = vmul.f32 %v977, %v976
    %v979 = vmul.f32 0.5, %v978
    %v980 = vsub.f32 1.5, %v979
    %v981 = vmul.f32 %v976, %v980
    %vm982 = vweird.f32 %v975
    %vm983 = vweird.f32 %v976
    %vm984 = vmor %vm982, %vm983
    %v985 = vsel %vm984, %v976, %v981
    %v986 = vmul.f32 %v969, %v985
    %v987 = vperm.slane %v963, 0
    %v988 = vmul.f32 %v986, %v987
    %v989 = vperm.slane %v964, 0
    %v990 = vadd.f32 %v988, %v989
    %v991 = vld [vmem:[#allocation2 + $0x188] sm:$0xff]
    %v992 = vld [vmem:[#allocation2 + $0x190] sm:$0xff]
    %v993 = vld [vmem:[#allocation2 + $0x198] sm:$0xff]
    %v994 = vld [vmem:[#allocation2 + $0x1a0] sm:$0xff]
    %v995 = vld [vmem:[#allocation2 + $0x1a8] sm:$0x1]
    %v996 = vperm.slane %v995, 0
    %v998 = vsel %vm333, %v990, 0
    %1000 = vmatpush.msra.mxu0 0.0
    %1001 = vmatpush.msra.mxu0 0.0
    %1002 = vmatpush.msra.mxu0 0.0
    %1003 = vmatpush.msra.mxu0 0.0
    %1004 = vmatpush.msra.mxu0 0.0
    %1005 = vmatpush.msra.mxu0 0.0
    %1006 = vmatpush.msra.mxu0 0.0
    %1007 = vmatpush.msra.mxu0 0.0
    %1008 = vmatpush.msra.mxu0 0.0
    %1009 = vmatpush.msra.mxu0 0.0
    %1010 = vmatpush.msra.mxu0 0.0
    %1011 = vmatpush.msra.mxu0 0.0
    %1012 = vmatpush.msra.mxu0 %v994
    %1013 = vmatpush.msra.mxu0 %v993
    %1014 = vmatpush.msra.mxu0 %v992
    %1015 = vmatpush.msra.mxu0 %v991
    %1016 = vmatmul.f32.gmra.mxu0 %v998
    %v1017 = vpop.f32.mrf.mxu0
    %v1018 = vadd.f32 %v996, %v1017
    %1019 = vdwg.mxu0
    %v1020 = vmul.f32 %v1018, %v1018
    %v1021 = vmul.f32 %v1018, %v1020
    %v1022 = vmul.f32 %v1021, 0.044715
    %v1023 = vadd.f32 %v1018, %v1022
    %v1024 = vmul.f32 %v1023, 0.7978846
    %v1025 = vtanh.pop %v1024
    %v1026 = vadd.f32 %v1025, 1.0
    %v1027 = vmul.f32 %v1026, 0.5
    %v1028 = vmul.f32 %v1018, %v1027
    %v1029 = vld [vmem:[#allocation2 + $0x1b0] sm:$0xff]
    %v1030 = vld [vmem:[#allocation2 + $0x1b8] sm:$0xff]
    %v1031 = vld [vmem:[#allocation2 + $0x1c0] sm:$0xff]
    %v1032 = vld [vmem:[#allocation2 + $0x1c8] sm:$0xff]
    %v1033 = vld [vmem:[#allocation2 + $0x1d0] sm:$0xff]
    %v1034 = vld [vmem:[#allocation2 + $0x1d8] sm:$0xff]
    %v1035 = vld [vmem:[#allocation2 + $0x1e0] sm:$0xff]
    %v1036 = vld [vmem:[#allocation2 + $0x1e8] sm:$0xff]
    %v1037 = vld [vmem:[#allocation2 + $0x1f0] sm:$0x1]
    %v1038 = vperm.slane %v1037, 0
    %v1040 = vsel %vm480, %v1028, 0
    %1042 = vmatpush.msra.mxu0 0.0
    %1043 = vmatpush.msra.mxu0 0.0
    %1044 = vmatpush.msra.mxu0 0.0
    %1045 = vmatpush.msra.mxu0 0.0
    %1046 = vmatpush.msra.mxu0 0.0
    %1047 = vmatpush.msra.mxu0 0.0
    %1048 = vmatpush.msra.mxu0 0.0
    %1049 = vmatpush.msra.mxu0 0.0
    %1050 = vmatpush.msra.mxu0 %v1036
    %1051 = vmatpush.msra.mxu0 %v1035
    %1052 = vmatpush.msra.mxu0 %v1034
    %1053 = vmatpush.msra.mxu0 %v1033
    %1054 = vmatpush.msra.mxu0 %v1032
    %1055 = vmatpush.msra.mxu0 %v1031
    %1056 = vmatpush.msra.mxu0 %v1030
    %1057 = vmatpush.msra.mxu0 %v1029
    %1058 = vmatmul.f32.gmra.mxu0 %v1040
    %v1059 = vpop.f32.mrf.mxu0
    %v1060 = vadd.f32 %v1038, %v1059
    %1061 = vdwg.mxu0
    %v1062 = vadd.f32 %v962, %v1060
    %v1063 = vld [vmem:[#allocation2 + $0x38] sm:$0x1]
    %v1064 = vld [vmem:[#allocation2 + $0x40] sm:$0x1]
    %v1065 = vsel %vm333, %v1062, 0.0
    %1066 = vadd.xlane.f32.xlu0 %v1065
    %v1067 = vpop.xlane.xlu0 %1066
    %v1068 = vmul.f32 %v1067, %v343
    %v1069 = vsub.f32 %v1062, %v1068
    %v1070 = vmul.f32 %v1069, %v1069
    %v1071 = vsel %vm333, %v1070, 0.0
    %1072 = vadd.xlane.f32.xlu0 %v1071
    %v1073 = vpop.xlane.xlu0 %1072
    %v1074 = vmul.f32 %v1073, %v343
    %v1075 = vadd.f32 %v1074, 1e-05
    %v1076 = vrsqrt.pop %v1075
    %v1077 = vmul.f32 %v1076, %v1075
    %v1078 = vmul.f32 %v1077, %v1076
    %v1079 = vmul.f32 0.5, %v1078
    %v1080 = vsub.f32 1.5, %v1079
    %v1081 = vmul.f32 %v1076, %v1080
    %vm1082 = vweird.f32 %v1075
    %vm1083 = vweird.f32 %v1076
    %vm1084 = vmor %vm1082, %vm1083
    %v1085 = vsel %vm1084, %v1076, %v1081
    %v1086 = vmul.f32 %v1069, %v1085
    %v1087 = vperm.slane %v1063, 0
    %v1088 = vmul.f32 %v1086, %v1087
    %v1089 = vperm.slane %v1064, 0
    %v1090 = vadd.f32 %v1088, %v1089
    %v1091 = vld [vmem:[#allocation2 + $0x48] sm:$0xff]
    %v1092 = vld [vmem:[#allocation2 + $0x50] sm:$0xff]
    %1094 = vset.pattern.permute.xlu0 0
    %1095 = vperm.xlu0 %1094, %v1092
    %v1096 = vpop.permute.xlu0 %1095
    %v1099 = vsel %vm333, %v1091, 0
    %v1102 = vsel %vm333, %v1090, 0
    %1104 = vmatpush.xpose.msra.mxu0 0.0
    %1105 = vmatpush.xpose.msra.mxu0 0.0
    %1106 = vmatpush.xpose.msra.mxu0 0.0
    %1107 = vmatpush.xpose.msra.mxu0 0.0
    %1108 = vmatpush.xpose.msra.mxu0 0.0
    %1109 = vmatpush.xpose.msra.mxu0 0.0
    %1110 = vmatpush.xpose.msra.mxu0 0.0
    %1111 = vmatpush.xpose.msra.mxu0 0.0
    %1112 = vmatpush.xpose.msra.mxu0 0.0
    %1113 = vmatpush.xpose.msra.mxu0 0.0
    %1114 = vmatpush.xpose.msra.mxu0 0.0
    %1115 = vmatpush.xpose.msra.mxu0 0.0
    %1116 = vmatpush.xpose.msra.mxu0 0.0
    %1117 = vmatpush.xpose.msra.mxu0 0.0
    %1118 = vmatpush.xpose.msra.mxu0 0.0
    %1119 = vmatpush.xpose.msra.mxu0 %v1102
    %1120 = vmatmul.f32.gmra.mxu0 %v1099
    %v1121 = vpop.f32.mrf.mxu0
    %v1122 = vadd.f32 %v1096, %v1121
    %1123 = vdwg.mxu0
    %v1124 = vsub.f32 %v1122, %v107
    %v1125 = vadd.f32 %v27, 1e-10
    %v1126 = vperm.slane %v1125, 0
    %v1127 = vrcp.pop %v1126
    %v1128 = vmul.f32 %v1126, %v1127
    %v1129 = vsub.f32 1.0, %v1128
    %v1130 = vmul.f32 %v1127, %v1129
    %v1131 = vadd.f32 %v1127, %v1130
    %vm1132 = vweird.f32 %v1126
    %vm1133 = vweird.f32 %v1127
    %vm1134 = vmor %vm1132, %vm1133
    %v1135 = vsel %vm1134, %v1127, %v1131
    %v1136 = vand.u32 2147483647, %v1126
    %vm1137 = vcmp.eq.f32.partialorder %v1136, 8.507059e+37
    %v1138 = vand.u32 %v1126, 2147483648
    %v1139 = vor.u32 1.1754944e-38, %v1138
    %v1140 = vsel %vm1137, %v1139, %v1135
    %v1141 = vmul.f32 %v1124, %v1140
    %v1142 = vmul.f32 %v1141, %v87
    %v1143 = vadd.f32 %v1142, %v60
    %1144 = vst.msk [vmem:[%s2] sm:$0xff] %vm43, %v1143
    %1146 = vrot.lane.b32.xlu0 %v107, 4
    %v1147 = vpop.permute.xlu0 %1146
    %v1149 = vsub.f32 %v1122, %v1147
    %1151 = vrot.lane.b32.xlu0 %v1126, 4
    %v1152 = vpop.permute.xlu0 %1151
    %v1154 = vrcp.pop %v1152
    %v1155 = vmul.f32 %v1152, %v1154
    %v1156 = vsub.f32 1.0, %v1155
    %v1157 = vmul.f32 %v1154, %v1156
    %v1158 = vadd.f32 %v1154, %v1157
    %vm1159 = vweird.f32 %v1152
    %vm1160 = vweird.f32 %v1154
    %vm1161 = vmor %vm1159, %vm1160
    %v1162 = vsel %vm1161, %v1154, %v1158
    %v1163 = vand.u32 2147483647, %v1152
    %vm1164 = vcmp.eq.f32.partialorder %v1163, 8.507059e+37
    %v1165 = vand.u32 %v1152, 2147483648
    %v1166 = vor.u32 1.1754944e-38, %v1165
    %v1167 = vsel %vm1164, %v1166, %v1162
    %v1168 = vmul.f32 %v1149, %v1167
    %1170 = vrot.lane.b32.xlu0 %v227, 4
    %v1171 = vpop.permute.xlu0 %1170
    %v1173 = vmul.f32 %v1168, %v1171
    %1175 = vrot.lane.b32.xlu0 %v200, 4
    %v1176 = vpop.permute.xlu0 %1175
    %v1178 = vadd.f32 %v1173, %v1176
    %1180 = vrot.lane.b32.xlu0 %v1178, 124
    %v1181 = vpop.permute.xlu0 %1180
    %s1183 = scalar_lea.vmem %s2, 8
    %1184 = vst.msk [vmem:[%s1183] sm:$0xff] %vm43, %v1181
    // Predicated region
    $region14: #{timesmamba_forward.1} parent=1 // pred_check
      _
    $region15: #{timesmamba_forward.1} parent=1 // pred_check_branch
      %1186 = sbr.rel (0) target = $region17
    $region16: #{timesmamba_forward.1} parent=1 // pred_region
      _
    $region17: #{timesmamba_forward.1} parent=1 // pred_fallthru
      _
    // Predicated region
    $region18: #{timesmamba_forward.1} parent=1 // pred_check
      _
    $region19: #{timesmamba_forward.1} parent=1 // pred_check_branch
      %1188 = sbr.rel (0) target = $region21
    $region20: #{timesmamba_forward.1} parent=1 // pred_region
      _
    $region21: #{timesmamba_forward.1} parent=1 // pred_fallthru
      _
    %1189 = vsyncpa [#allocation3], 1

</llo_original>
